<compile_context>
chip_gen: v5e
topology: v5e:2x2
jax: 0.10.0
libtpu: 0.0.40
codegen_flags: <defaults>
</compile_context>

<pallas_src>
import functools

import jax
import jax.numpy as jnp
from jax.experimental import pallas as pl
from jax.experimental.pallas import tpu as pltpu


def _mv2_kernel(x_ref, w1_ref, b1_ref, wdw_ref, b2_ref, w3_ref, b3_ref,
                o_ref, pad_ref, *, H, W, cin, hidden, oup, use_res, has_expand):
    tb = x_ref.shape[0]
    x = x_ref[...].astype(jnp.float32)                      # (tb, H, W, cin)
    x2d = x.reshape(tb * H * W, cin)

    # ---- 1x1 expand conv + BN1 (folded) + ReLU: one big MXU matmul ----
    if has_expand:
        h1 = jnp.dot(x2d, w1_ref[...], preferred_element_type=jnp.float32)
        h1 = jnp.maximum(h1 + b1_ref[...], 0.0)             # (tb*H*W, hidden)
    else:
        h1 = x2d                                            # expansion == 1: no expand stage

    a = h1.reshape(tb, H, W, hidden)

    # ---- 3x3 depthwise conv (stride 1, pad 1) + BN2 (folded) + ReLU ----
    # Zero-padded copy in VMEM scratch; border stays zero.
    pad_ref[...] = jnp.zeros(pad_ref.shape, jnp.float32)
    pad_ref[:, 1:1 + H, 1:1 + W, :] = a

    acc = jnp.zeros((tb, H, W, hidden), jnp.float32)
    for t in range(9):                                      # static unroll over the 9 taps
        dy, dx = t // 3, t % 3
        win = pad_ref[:, dy:dy + H, dx:dx + W, :]           # (tb, H, W, hidden)
        acc = acc + win * wdw_ref[t]                        # per-channel tap weight (hidden,)
    h2 = jnp.maximum(acc + b2_ref[...], 0.0)

    # ---- 1x1 project conv + BN3 (folded) ----
    proj = jnp.dot(h2.reshape(tb * H * W, hidden), w3_ref[...],
                   preferred_element_type=jnp.float32) + b3_ref[...]
    if use_res:
        proj = proj + x2d                                   # residual (stride==1 and cin==oup)
    o_ref[...] = proj.reshape(tb, H, W, oup).astype(o_ref.dtype)


def _fold_bn(gamma, beta, mean, var, eps):
    s = gamma * jax.lax.rsqrt(var + eps)
    return s, beta - mean * s


def _pick_tile_b(batch, H, W, hidden, budget_bytes=8 << 20):
    # Rough per-image VMEM need: padded scratch + acc + h1 (f32, hidden-wide).
    per_img = 3 * (H + 2) * (W + 2) * hidden * 4
    cap = max(1, budget_bytes // max(per_img, 1))
    divisors = [d for d in range(1, batch + 1) if batch % d == 0 and d <= cap]
    # Prefer >= 2 grid steps so v7x's two TensorCores both get work.
    pref = [d for d in divisors if batch // d >= 2]
    if pref:
        return max(pref)
    return max(divisors) if divisors else 1


def mv2block_pallas(x, w1, bn1, w_dw, bn2, w3, bn3, *, stride=1, expansion=4,
                    eps=1e-5):
    """Forward pass of MV2Block.

    x:    (B, Cin, H, W) NCHW (torch layout)
    w1:   (hidden, Cin)      1x1 expand conv weight (ignored when expansion == 1)
    w_dw: (hidden, 1, 3, 3)  3x3 depthwise conv weight
    w3:   (oup, hidden)      1x1 project conv weight
    bn{1,2,3}: (gamma, beta, running_mean, running_var)   -- inference-mode BN
    """
    B, cin, H, W = x.shape
    hidden = w_dw.shape[0]
    oup = w3.shape[0]
    assert stride in (1, 2)
    use_res = (stride == 1) and (cin == oup)
    has_expand = (expansion != 1)

    s1, b1 = _fold_bn(*bn1, eps)
    s2, b2 = _fold_bn(*bn2, eps)
    s3, b3 = _fold_bn(*bn3, eps)

    if has_expand:
        w1_eff = (w1 * s1[:, None]).T.astype(jnp.float32)                 # (cin, hidden)
        b1_eff = b1.reshape(1, hidden).astype(jnp.float32)
    else:
        w1_eff = jnp.zeros((cin, hidden), jnp.float32)                    # unused
        b1_eff = jnp.zeros((1, hidden), jnp.float32)

    wdw_eff = (w_dw.reshape(hidden, 9) * s2[:, None]).T.astype(jnp.float32)  # (9, hidden), t = dy*3+dx
    b2_eff = b2.reshape(1, hidden).astype(jnp.float32)
    w3_eff = (w3 * s3[:, None]).T.astype(jnp.float32)                     # (hidden, oup)
    b3_eff = b3.reshape(1, oup).astype(jnp.float32)

    x_nhwc = jnp.transpose(x, (0, 2, 3, 1)).astype(jnp.float32)           # (B, H, W, cin)

    tb = _pick_tile_b(B, H, W, hidden)
    grid = (B // tb,)

    kernel = functools.partial(
        _mv2_kernel, H=H, W=W, cin=cin, hidden=hidden, oup=oup,
        use_res=use_res, has_expand=has_expand)

    out_nhwc = pl.pallas_call(
        kernel,
        out_shape=jax.ShapeDtypeStruct((B, H, W, oup), x.dtype),
        grid_spec=pltpu.PrefetchScalarGridSpec(
            num_scalar_prefetch=0,
            grid=grid,
            in_specs=[
                pl.BlockSpec((tb, H, W, cin), lambda i: (i, 0, 0, 0)),
                pl.BlockSpec((cin, hidden), lambda i: (0, 0)),
                pl.BlockSpec((1, hidden), lambda i: (0, 0)),
                pl.BlockSpec((9, hidden), lambda i: (0, 0)),
                pl.BlockSpec((1, hidden), lambda i: (0, 0)),
                pl.BlockSpec((hidden, oup), lambda i: (0, 0)),
                pl.BlockSpec((1, oup), lambda i: (0, 0)),
            ],
            out_specs=pl.BlockSpec((tb, H, W, oup), lambda i: (i, 0, 0, 0)),
            scratch_shapes=[pltpu.VMEM((tb, H + 2, W + 2, hidden), jnp.float32)],
        ),
        compiler_params=pltpu.CompilerParams(
            dimension_semantics=("parallel",),
            vmem_limit_bytes=32 * 1024 * 1024),
    )(x_nhwc, w1_eff, b1_eff, wdw_eff, b2_eff, w3_eff, b3_eff)

    if stride == 2:
        # Pointwise stages commute with spatial subsampling, so subsampling the
        # stride-1 result at even positions matches torch's stride-2 conv exactly.
        # TODO(synk): a strided-tap kernel would avoid the 4x extra pointwise work here.
        out_nhwc = out_nhwc[:, ::2, ::2, :]

    return jnp.transpose(out_nhwc, (0, 3, 1, 2))


# ----------------------------- pure-JAX reference -----------------------------

def _bn_ref(y, p, eps):
    gamma, beta, mean, var = p
    s = (gamma * jax.lax.rsqrt(var + eps)).reshape(1, -1, 1, 1)
    return (y - mean.reshape(1, -1, 1, 1)) * s + beta.reshape(1, -1, 1, 1)


def mv2block_reference(x, w1, bn1, w_dw, bn2, w3, bn3, *, stride=1, expansion=4,
                       eps=1e-5):
    hidden = w_dw.shape[0]
    oup = w3.shape[0]
    dn = ('NCHW', 'OIHW', 'NCHW')
    h = x
    if expansion != 1:
        h = jax.lax.conv_general_dilated(h, w1[:, :, None, None], (1, 1), 'VALID',
                                         dimension_numbers=dn)
        h = jax.nn.relu(_bn_ref(h, bn1, eps))
    h = jax.lax.conv_general_dilated(h, w_dw, (stride, stride), ((1, 1), (1, 1)),
                                     dimension_numbers=dn,
                                     feature_group_count=hidden)
    h = jax.nn.relu(_bn_ref(h, bn2, eps))
    h = jax.lax.conv_general_dilated(h, w3[:, :, None, None], (1, 1), 'VALID',
                                     dimension_numbers=dn)
    h = _bn_ref(h, bn3, eps)
    if stride == 1 and x.shape[1] == oup:
        h = x + h
    return h


if __name__ == "__main__":
    # Small shapes consistent with the module (stride=1, expansion=4 -> residual path).
    B, CIN, H, W = 2, 32, 16, 16
    OUP, STRIDE, EXPANSION = 32, 1, 4
    HIDDEN = CIN * EXPANSION

    key = jax.random.PRNGKey(0)
    ks = jax.random.split(key, 8)

    x = jax.random.normal(ks[0], (B, CIN, H, W), dtype=jnp.float32)
    w1 = jax.random.normal(ks[1], (HIDDEN, CIN), dtype=jnp.float32) * 0.1
    w_dw = jax.random.normal(ks[2], (HIDDEN, 1, 3, 3), dtype=jnp.float32) * 0.1
    w3 = jax.random.normal(ks[3], (OUP, HIDDEN), dtype=jnp.float32) * 0.1

    def bn_params(k, c):
        kg, kb, km, kv = jax.random.split(k, 4)
        gamma = 1.0 + 0.1 * jax.random.normal(kg, (c,), dtype=jnp.float32)
        beta = 0.1 * jax.random.normal(kb, (c,), dtype=jnp.float32)
        mean = 0.1 * jax.random.normal(km, (c,), dtype=jnp.float32)
        var = jax.random.uniform(kv, (c,), dtype=jnp.float32, minval=0.5, maxval=1.5)
        return (gamma, beta, mean, var)

    bn1 = bn_params(ks[4], HIDDEN)
    bn2 = bn_params(ks[5], HIDDEN)
    bn3 = bn_params(ks[6], OUP)

    out = mv2block_pallas(x, w1, bn1, w_dw, bn2, w3, bn3,
                          stride=STRIDE, expansion=EXPANSION)
    out = jax.block_until_ready(out)

    ref = mv2block_reference(x, w1, bn1, w_dw, bn2, w3, bn3,
                             stride=STRIDE, expansion=EXPANSION)
    assert out.shape == ref.shape == (B, OUP, H, W)
    max_err = float(jnp.max(jnp.abs(out - ref)))
    assert jnp.allclose(out, ref, atol=1e-3, rtol=1e-3), f"mismatch vs reference: {max_err}"

    print("KERNEL_OK")
</pallas_src>

<mosaic_0001>
module attributes {stable_mosaic.version = 11 : i64} {
  func.func @_mv2_kernel(%arg0: i32, %arg1: memref<1x16x16x32xf32, #tpu.memory_space<vmem>>, %arg2: memref<32x128xf32, #tpu.memory_space<vmem>>, %arg3: memref<1x128xf32, #tpu.memory_space<vmem>>, %arg4: memref<9x128xf32, #tpu.memory_space<vmem>>, %arg5: memref<1x128xf32, #tpu.memory_space<vmem>>, %arg6: memref<128x32xf32, #tpu.memory_space<vmem>>, %arg7: memref<1x32xf32, #tpu.memory_space<vmem>>, %arg8: memref<1x16x16x32xf32, #tpu.memory_space<vmem>>, %arg9: memref<1x18x18x128xf32, #tpu.memory_space<vmem>>) attributes {dimension_semantics = [#tpu.dimension_semantics<parallel>], iteration_bounds = array<i64: 2>, scalar_prefetch = 0 : i64, scratch_operands = 1 : i64, tpu.core_type = #tpu.core_type<tc>, window_params = [{transform_indices = @transform_0, window_bounds = array<i64: 1, 16, 16, 32>}, {pipeline_mode = #tpu.pipeline_mode<synchronous>, transform_indices = @transform_1, window_bounds = array<i64: 32, 128>}, {pipeline_mode = #tpu.pipeline_mode<synchronous>, transform_indices = @transform_2, window_bounds = array<i64: 1, 128>}, {pipeline_mode = #tpu.pipeline_mode<synchronous>, transform_indices = @transform_3, window_bounds = array<i64: 9, 128>}, {pipeline_mode = #tpu.pipeline_mode<synchronous>, transform_indices = @transform_4, window_bounds = array<i64: 1, 128>}, {pipeline_mode = #tpu.pipeline_mode<synchronous>, transform_indices = @transform_5, window_bounds = array<i64: 128, 32>}, {pipeline_mode = #tpu.pipeline_mode<synchronous>, transform_indices = @transform_6, window_bounds = array<i64: 1, 32>}, {transform_indices = @transform_7, window_bounds = array<i64: 1, 16, 16, 32>}]} {
    %c0 = arith.constant 0 : index
    %c0_0 = arith.constant 0 : index
    %c0_1 = arith.constant 0 : index
    %c0_2 = arith.constant 0 : index
    %0 = vector.load %arg1[%c0, %c0_0, %c0_1, %c0_2] : memref<1x16x16x32xf32, #tpu.memory_space<vmem>>, vector<1x16x16x32xf32>
    %1 = vector.shape_cast %0 : vector<1x16x16x32xf32> to vector<256x32xf32>
    %c0_3 = arith.constant 0 : index
    %c0_4 = arith.constant 0 : index
    %2 = vector.load %arg2[%c0_3, %c0_4] : memref<32x128xf32, #tpu.memory_space<vmem>>, vector<32x128xf32>
    %cst = arith.constant dense<0.000000e+00> : vector<256x128xf32>
    %3 = tpu.matmul %1, %2, %cst {dimension_numbers = #tpu.dot_dimension_numbers<[1], [0], [0], [1], [0, 0, 1, 1], [], []>} : vector<256x32xf32>, vector<32x128xf32>, vector<256x128xf32> -> vector<256x128xf32>
    %c0_5 = arith.constant 0 : index
    %c0_6 = arith.constant 0 : index
    %4 = vector.load %arg3[%c0_5, %c0_6] : memref<1x128xf32, #tpu.memory_space<vmem>>, vector<1x128xf32>
    %5 = vector.broadcast %4 : vector<1x128xf32> to vector<256x128xf32>
    %6 = arith.addf %3, %5 : vector<256x128xf32>
    %cst_7 = arith.constant 0.000000e+00 : f32
    %7 = vector.broadcast %cst_7 : f32 to vector<256x128xf32>
    %8 = arith.maximumf %6, %7 : vector<256x128xf32>
    %9 = vector.shape_cast %8 : vector<256x128xf32> to vector<1x16x16x128xf32>
    %cst_8 = arith.constant 0.000000e+00 : f32
    %10 = vector.broadcast %cst_8 : f32 to vector<1x18x18x128xf32>
    %c0_9 = arith.constant 0 : index
    %c0_10 = arith.constant 0 : index
    %c0_11 = arith.constant 0 : index
    %c0_12 = arith.constant 0 : index
    %11 = vector.load %arg9[%c0_9, %c0_10, %c0_11, %c0_12] : memref<1x18x18x128xf32, #tpu.memory_space<vmem>>, vector<1x18x18x128xf32>
    tpu.vector_store %arg9[%c0_9, %c0_10, %c0_11, %c0_12], %10 {strides = array<i32>} : memref<1x18x18x128xf32, #tpu.memory_space<vmem>>, vector<1x18x18x128xf32>,
    %c0_13 = arith.constant 0 : index
    %c1 = arith.constant 1 : index
    %c1_14 = arith.constant 1 : index
    %c0_15 = arith.constant 0 : index
    %12 = vector.load %arg9[%c0_13, %c1, %c1_14, %c0_15] : memref<1x18x18x128xf32, #tpu.memory_space<vmem>>, vector<1x16x16x128xf32>
    tpu.vector_store %arg9[%c0_13, %c1, %c1_14, %c0_15], %9 {strides = array<i32>} : memref<1x18x18x128xf32, #tpu.memory_space<vmem>>, vector<1x16x16x128xf32>,
    %cst_16 = arith.constant 0.000000e+00 : f32
    %13 = vector.broadcast %cst_16 : f32 to vector<1x16x16x128xf32>
    %c0_17 = arith.constant 0 : index
    %c0_18 = arith.constant 0 : index
    %c0_19 = arith.constant 0 : index
    %c0_20 = arith.constant 0 : index
    %14 = vector.load %arg9[%c0_17, %c0_18, %c0_19, %c0_20] : memref<1x18x18x128xf32, #tpu.memory_space<vmem>>, vector<1x16x16x128xf32>
    %c0_21 = arith.constant 0 : index
    %c0_22 = arith.constant 0 : index
    %15 = vector.load %arg4[%c0_21, %c0_22] : memref<9x128xf32, #tpu.memory_space<vmem>>, vector<1x128xf32>
    %16 = vector.shape_cast %15 : vector<1x128xf32> to vector<128xf32>
    %17 = vector.shape_cast %16 : vector<128xf32> to vector<1x1x1x128xf32>
    %18 = vector.broadcast %17 : vector<1x1x1x128xf32> to vector<1x16x16x128xf32>
    %19 = arith.mulf %14, %18 : vector<1x16x16x128xf32>
    %20 = arith.addf %13, %19 : vector<1x16x16x128xf32>
    %c0_23 = arith.constant 0 : index
    %c0_24 = arith.constant 0 : index
    %c1_25 = arith.constant 1 : index
    %c0_26 = arith.constant 0 : index
    %21 = vector.load %arg9[%c0_23, %c0_24, %c1_25, %c0_26] : memref<1x18x18x128xf32, #tpu.memory_space<vmem>>, vector<1x16x16x128xf32>
    %c1_27 = arith.constant 1 : index
    %c0_28 = arith.constant 0 : index
    %22 = vector.load %arg4[%c1_27, %c0_28] : memref<9x128xf32, #tpu.memory_space<vmem>>, vector<1x128xf32>
    %23 = vector.shape_cast %22 : vector<1x128xf32> to vector<128xf32>
    %24 = vector.shape_cast %23 : vector<128xf32> to vector<1x1x1x128xf32>
    %25 = vector.broadcast %24 : vector<1x1x1x128xf32> to vector<1x16x16x128xf32>
    %26 = arith.mulf %21, %25 : vector<1x16x16x128xf32>
    %27 = arith.addf %20, %26 : vector<1x16x16x128xf32>
    %c0_29 = arith.constant 0 : index
    %c0_30 = arith.constant 0 : index
    %c2 = arith.constant 2 : index
    %c0_31 = arith.constant 0 : index
    %28 = vector.load %arg9[%c0_29, %c0_30, %c2, %c0_31] : memref<1x18x18x128xf32, #tpu.memory_space<vmem>>, vector<1x16x16x128xf32>
    %c2_32 = arith.constant 2 : index
    %c0_33 = arith.constant 0 : index
    %29 = vector.load %arg4[%c2_32, %c0_33] : memref<9x128xf32, #tpu.memory_space<vmem>>, vector<1x128xf32>
    %30 = vector.shape_cast %29 : vector<1x128xf32> to vector<128xf32>
    %31 = vector.shape_cast %30 : vector<128xf32> to vector<1x1x1x128xf32>
    %32 = vector.broadcast %31 : vector<1x1x1x128xf32> to vector<1x16x16x128xf32>
    %33 = arith.mulf %28, %32 : vector<1x16x16x128xf32>
    %34 = arith.addf %27, %33 : vector<1x16x16x128xf32>
    %c0_34 = arith.constant 0 : index
    %c1_35 = arith.constant 1 : index
    %c0_36 = arith.constant 0 : index
    %c0_37 = arith.constant 0 : index
    %35 = vector.load %arg9[%c0_34, %c1_35, %c0_36, %c0_37] : memref<1x18x18x128xf32, #tpu.memory_space<vmem>>, vector<1x16x16x128xf32>
    %c3 = arith.constant 3 : index
    %c0_38 = arith.constant 0 : index
    %36 = vector.load %arg4[%c3, %c0_38] : memref<9x128xf32, #tpu.memory_space<vmem>>, vector<1x128xf32>
    %37 = vector.shape_cast %36 : vector<1x128xf32> to vector<128xf32>
    %38 = vector.shape_cast %37 : vector<128xf32> to vector<1x1x1x128xf32>
    %39 = vector.broadcast %38 : vector<1x1x1x128xf32> to vector<1x16x16x128xf32>
    %40 = arith.mulf %35, %39 : vector<1x16x16x128xf32>
    %41 = arith.addf %34, %40 : vector<1x16x16x128xf32>
    %c0_39 = arith.constant 0 : index
    %c1_40 = arith.constant 1 : index
    %c1_41 = arith.constant 1 : index
    %c0_42 = arith.constant 0 : index
    %42 = vector.load %arg9[%c0_39, %c1_40, %c1_41, %c0_42] : memref<1x18x18x128xf32, #tpu.memory_space<vmem>>, vector<1x16x16x128xf32>
    %c4 = arith.constant 4 : index
    %c0_43 = arith.constant 0 : index
    %43 = vector.load %arg4[%c4, %c0_43] : memref<9x128xf32, #tpu.memory_space<vmem>>, vector<1x128xf32>
    %44 = vector.shape_cast %43 : vector<1x128xf32> to vector<128xf32>
    %45 = vector.shape_cast %44 : vector<128xf32> to vector<1x1x1x128xf32>
    %46 = vector.broadcast %45 : vector<1x1x1x128xf32> to vector<1x16x16x128xf32>
    %47 = arith.mulf %42, %46 : vector<1x16x16x128xf32>
    %48 = arith.addf %41, %47 : vector<1x16x16x128xf32>
    %c0_44 = arith.constant 0 : index
    %c1_45 = arith.constant 1 : index
    %c2_46 = arith.constant 2 : index
    %c0_47 = arith.constant 0 : index
    %49 = vector.load %arg9[%c0_44, %c1_45, %c2_46, %c0_47] : memref<1x18x18x128xf32, #tpu.memory_space<vmem>>, vector<1x16x16x128xf32>
    %c5 = arith.constant 5 : index
    %c0_48 = arith.constant 0 : index
    %50 = vector.load %arg4[%c5, %c0_48] : memref<9x128xf32, #tpu.memory_space<vmem>>, vector<1x128xf32>
    %51 = vector.shape_cast %50 : vector<1x128xf32> to vector<128xf32>
    %52 = vector.shape_cast %51 : vector<128xf32> to vector<1x1x1x128xf32>
    %53 = vector.broadcast %52 : vector<1x1x1x128xf32> to vector<1x16x16x128xf32>
    %54 = arith.mulf %49, %53 : vector<1x16x16x128xf32>
    %55 = arith.addf %48, %54 : vector<1x16x16x128xf32>
    %c0_49 = arith.constant 0 : index
    %c2_50 = arith.constant 2 : index
    %c0_51 = arith.constant 0 : index
    %c0_52 = arith.constant 0 : index
    %56 = vector.load %arg9[%c0_49, %c2_50, %c0_51, %c0_52] : memref<1x18x18x128xf32, #tpu.memory_space<vmem>>, vector<1x16x16x128xf32>
    %c6 = arith.constant 6 : index
    %c0_53 = arith.constant 0 : index
    %57 = vector.load %arg4[%c6, %c0_53] : memref<9x128xf32, #tpu.memory_space<vmem>>, vector<1x128xf32>
    %58 = vector.shape_cast %57 : vector<1x128xf32> to vector<128xf32>
    %59 = vector.shape_cast %58 : vector<128xf32> to vector<1x1x1x128xf32>
    %60 = vector.broadcast %59 : vector<1x1x1x128xf32> to vector<1x16x16x128xf32>
    %61 = arith.mulf %56, %60 : vector<1x16x16x128xf32>
    %62 = arith.addf %55, %61 : vector<1x16x16x128xf32>
    %c0_54 = arith.constant 0 : index
    %c2_55 = arith.constant 2 : index
    %c1_56 = arith.constant 1 : index
    %c0_57 = arith.constant 0 : index
    %63 = vector.load %arg9[%c0_54, %c2_55, %c1_56, %c0_57] : memref<1x18x18x128xf32, #tpu.memory_space<vmem>>, vector<1x16x16x128xf32>
    %c7 = arith.constant 7 : index
    %c0_58 = arith.constant 0 : index
    %64 = vector.load %arg4[%c7, %c0_58] : memref<9x128xf32, #tpu.memory_space<vmem>>, vector<1x128xf32>
    %65 = vector.shape_cast %64 : vector<1x128xf32> to vector<128xf32>
    %66 = vector.shape_cast %65 : vector<128xf32> to vector<1x1x1x128xf32>
    %67 = vector.broadcast %66 : vector<1x1x1x128xf32> to vector<1x16x16x128xf32>
    %68 = arith.mulf %63, %67 : vector<1x16x16x128xf32>
    %69 = arith.addf %62, %68 : vector<1x16x16x128xf32>
    %c0_59 = arith.constant 0 : index
    %c2_60 = arith.constant 2 : index
    %c2_61 = arith.constant 2 : index
    %c0_62 = arith.constant 0 : index
    %70 = vector.load %arg9[%c0_59, %c2_60, %c2_61, %c0_62] : memref<1x18x18x128xf32, #tpu.memory_space<vmem>>, vector<1x16x16x128xf32>
    %c8 = arith.constant 8 : index
    %c0_63 = arith.constant 0 : index
    %71 = vector.load %arg4[%c8, %c0_63] : memref<9x128xf32, #tpu.memory_space<vmem>>, vector<1x128xf32>
    %72 = vector.shape_cast %71 : vector<1x128xf32> to vector<128xf32>
    %73 = vector.shape_cast %72 : vector<128xf32> to vector<1x1x1x128xf32>
    %74 = vector.broadcast %73 : vector<1x1x1x128xf32> to vector<1x16x16x128xf32>
    %75 = arith.mulf %70, %74 : vector<1x16x16x128xf32>
    %76 = arith.addf %69, %75 : vector<1x16x16x128xf32>
    %c0_64 = arith.constant 0 : index
    %c0_65 = arith.constant 0 : index
    %77 = vector.load %arg5[%c0_64, %c0_65] : memref<1x128xf32, #tpu.memory_space<vmem>>, vector<1x128xf32>
    %78 = vector.shape_cast %77 : vector<1x128xf32> to vector<1x1x1x128xf32>
    %79 = vector.broadcast %78 : vector<1x1x1x128xf32> to vector<1x16x16x128xf32>
    %80 = arith.addf %76, %79 : vector<1x16x16x128xf32>
    %cst_66 = arith.constant 0.000000e+00 : f32
    %81 = vector.broadcast %cst_66 : f32 to vector<1x16x16x128xf32>
    %82 = arith.maximumf %80, %81 : vector<1x16x16x128xf32>
    %83 = vector.shape_cast %82 : vector<1x16x16x128xf32> to vector<256x128xf32>
    %c0_67 = arith.constant 0 : index
    %c0_68 = arith.constant 0 : index
    %84 = vector.load %arg6[%c0_67, %c0_68] : memref<128x32xf32, #tpu.memory_space<vmem>>, vector<128x32xf32>
    %cst_69 = arith.constant dense<0.000000e+00> : vector<256x32xf32>
    %85 = tpu.matmul %83, %84, %cst_69 {dimension_numbers = #tpu.dot_dimension_numbers<[1], [0], [0], [1], [0, 0, 1, 1], [], []>} : vector<256x128xf32>, vector<128x32xf32>, vector<256x32xf32> -> vector<256x32xf32>
    %c0_70 = arith.constant 0 : index
    %c0_71 = arith.constant 0 : index
    %86 = vector.load %arg7[%c0_70, %c0_71] : memref<1x32xf32, #tpu.memory_space<vmem>>, vector<1x32xf32>
    %87 = vector.broadcast %86 : vector<1x32xf32> to vector<256x32xf32>
    %88 = arith.addf %85, %87 : vector<256x32xf32>
    %89 = arith.addf %88, %1 : vector<256x32xf32>
    %90 = vector.shape_cast %89 : vector<256x32xf32> to vector<1x16x16x32xf32>
    %c0_72 = arith.constant 0 : index
    %c0_73 = arith.constant 0 : index
    %c0_74 = arith.constant 0 : index
    %c0_75 = arith.constant 0 : index
    %91 = vector.load %arg8[%c0_72, %c0_73, %c0_74, %c0_75] : memref<1x16x16x32xf32, #tpu.memory_space<vmem>>, vector<1x16x16x32xf32>
    tpu.vector_store %arg8[%c0_72, %c0_73, %c0_74, %c0_75], %90 {strides = array<i32>} : memref<1x16x16x32xf32, #tpu.memory_space<vmem>>, vector<1x16x16x32xf32>,
    return
  }
  func.func @transform_0(%arg0: i32) -> (i32, i32, i32, i32) {
    %c0_i32 = arith.constant 0 : i32
    %c0_i32_0 = arith.constant 0 : i32
    %c0_i32_1 = arith.constant 0 : i32
    %c0_i32_2 = arith.constant 0 : i32
    return %arg0, %c0_i32, %c0_i32_0, %c0_i32_1 : i32, i32, i32, i32
  }
  func.func @transform_1(%arg0: i32) -> (i32, i32) {
    %c0_i32 = arith.constant 0 : i32
    %c0_i32_0 = arith.constant 0 : i32
    %c0_i32_1 = arith.constant 0 : i32
    return %c0_i32, %c0_i32_0 : i32, i32
  }
  func.func @transform_2(%arg0: i32) -> (i32, i32) {
    %c0_i32 = arith.constant 0 : i32
    %c0_i32_0 = arith.constant 0 : i32
    %c0_i32_1 = arith.constant 0 : i32
    return %c0_i32, %c0_i32_0 : i32, i32
  }
  func.func @transform_3(%arg0: i32) -> (i32, i32) {
    %c0_i32 = arith.constant 0 : i32
    %c0_i32_0 = arith.constant 0 : i32
    %c0_i32_1 = arith.constant 0 : i32
    return %c0_i32, %c0_i32_0 : i32, i32
  }
  func.func @transform_4(%arg0: i32) -> (i32, i32) {
    %c0_i32 = arith.constant 0 : i32
    %c0_i32_0 = arith.constant 0 : i32
    %c0_i32_1 = arith.constant 0 : i32
    return %c0_i32, %c0_i32_0 : i32, i32
  }
  func.func @transform_5(%arg0: i32) -> (i32, i32) {
    %c0_i32 = arith.constant 0 : i32
    %c0_i32_0 = arith.constant 0 : i32
    %c0_i32_1 = arith.constant 0 : i32
    return %c0_i32, %c0_i32_0 : i32, i32
  }
  func.func @transform_6(%arg0: i32) -> (i32, i32) {
    %c0_i32 = arith.constant 0 : i32
    %c0_i32_0 = arith.constant 0 : i32
    %c0_i32_1 = arith.constant 0 : i32
    return %c0_i32, %c0_i32_0 : i32, i32
  }
  func.func @transform_7(%arg0: i32) -> (i32, i32, i32, i32) {
    %c0_i32 = arith.constant 0 : i32
    %c0_i32_0 = arith.constant 0 : i32
    %c0_i32_1 = arith.constant 0 : i32
    %c0_i32_2 = arith.constant 0 : i32
    return %arg0, %c0_i32, %c0_i32_0, %c0_i32_1 : i32, i32, i32, i32
  }
}

</mosaic_0001>

<llo_original>
// kernel: tpu_custom_call.1
$region0: #{tpu_custom_call.1}
  #allocation0 [shape = 'u32[]', space=smem, size = 0x4, offset = 0x4, fixed_abs, tag = 'smem constant byte address 0x4 - core index']
  #allocation1 [shape = 'u32[72,128]{1,0:T(1,128)}', space=vmem, size = 0x9000, scoped, tag = 'internal scratch']
  #allocation2 [shape = 'f32[1,18,18,128]{3,2,1,0:T(8,128)}', space=vmem, size = 0x36000, scoped, tag = 'scratch operand']
  %s0 = inlined_call_operand.hbm [shape: f32[2,16,16,32], index: 0, kind: input, shape index: {}]
  %s1 = inlined_call_operand.vmem [shape: f32[32,128], index: 1, kind: input, shape index: {}]
  %s2 = inlined_call_operand.vmem [shape: f32[1,128], index: 2, kind: input, shape index: {}]
  %s3 = inlined_call_operand.vmem [shape: f32[9,128], index: 3, kind: input, shape index: {}]
  %s4 = inlined_call_operand.vmem [shape: f32[1,128], index: 4, kind: input, shape index: {}]
  %s5 = inlined_call_operand.vmem [shape: f32[128,32], index: 5, kind: input, shape index: {}]
  %s6 = inlined_call_operand.vmem [shape: f32[1,32], index: 6, kind: input, shape index: {}]
  %s7 = inlined_call_operand.hbm [shape: f32[2,16,16,32], index: 7, kind: output, shape index: {}]
  %s8 = sld [smem:[#allocation0]]
  $region65: #{tpu_custom_call.1} parent=0
    _
  %s10 = ssub.s32 1, %s8
  %s11 = scalar_select 0, %s10, %s8
  $region1: #{tpu_custom_call.1} parent=0
    #allocation3 [shape = 'u8[262144]{0}', space=vmem, size = 0x40000, scoped, tag = 'input window, operand 0']
    #allocation4 [shape = 's32[2]{0}', space=sflag, size = 0x8, scoped, tag = 'scoped memory for tpu_custom_call.1']
    #allocation5 [shape = 's32[2]{0}', space=sflag, size = 0x8, scoped, tag = 'scoped memory for tpu_custom_call.1']
    #allocation6 [shape = 'u8[262144]{0}', space=vmem, size = 0x40000, scoped, tag = 'output window, operand 0']
    %12 = vsyncpa [#allocation4], 0
    %s13 = scalar_lea.sflag [#allocation4], 1
    %14 = vsyncpa %s13, 0
    %15 = vsyncpa [#allocation5], 0
    %s16 = scalar_lea.sflag [#allocation5], 1
    %17 = vsyncpa %s16, 0
    loop: start=0, step=1, limit=4
    $region2: #{tpu_custom_call.1} parent=1 // loop_pre_header
      _
    $region3: #{tpu_custom_call.1} parent=1 // loop_header
      %s19 = sphi 0, %s23
      %p20 = scmp.ge.s32.totalorder %s19, 4
      %s29 = sphi 0, %s31
      %s32 = sphi 0, %s29
      %s33 = sphi 0, %s32
      %s49 = sphi 0, %s33
      %s53 = sphi 0, %s53
      %s55 = sphi 0, %s53
      %s56 = sphi 0, %s55
      %s70 = sphi 0, %s56
      %s74 = sphi 0, %s74
      %s76 = sphi 0, %s74
      %s77 = sphi 0, %s76
      %s91 = sphi 0, %s77
      %s95 = sphi 0, %s95
      %s97 = sphi 0, %s95
      %s98 = sphi 0, %s97
      %s112 = sphi 0, %s98
      %s116 = sphi 0, %s116
      %s118 = sphi 0, %s116
      %s119 = sphi 0, %s118
      %s133 = sphi 0, %s119
      %s137 = sphi 0, %s137
      %s139 = sphi 0, %s137
      %s140 = sphi 0, %s139
      %s154 = sphi 0, %s140
      %s158 = sphi 0, %s158
      %s160 = sphi 0, %s158
      %s161 = sphi 0, %s160
      %s175 = sphi 0, %s161
      %s181 = sphi 0, %s183
      %s184 = sphi 0, %s181
      %s185 = sphi 0, %s184
      %s201 = sphi 0, %s185
    $region4: #{tpu_custom_call.1} parent=1 // loop_header_branch
      %22 = sbr.rel (%p20) target = $region8
    $region5: #{tpu_custom_call.1} parent=1 // loop_body
      %s24 = ssub.s32 %s19, 1
      %s25 = ssub.s32 %s19, 2
      %s26 = sadd.s32 %s19, 1
      %s27 = ssub.s32 %s19, %s26
      %p28 = scmp.eq.s32.totalorder %s27, 0
      %s30 = sadd.s32 %s29, 1
      %s31 = scalar_select %p28, %s29, %s30
      %p34 = pneg %p28
      %p35 = scmp.eq.s32.totalorder %s19, 1
      %p36 = por %p34, %p35
      %p37 = scmp.ne.s32.totalorder %s29, %s32
      %p38 = scmp.eq.s32.totalorder %s19, 0
      %p39 = por %p37, %p38
      %p40 = scmp.ne.s32.totalorder %s29, %s32
      %p41 = scmp.eq.s32.totalorder %s24, 1
      %p42 = por %p40, %p41
      %p43 = scmp.ne.s32.totalorder %s32, %s33
      %p44 = scmp.eq.s32.totalorder %s24, 0
      %p45 = por %p43, %p44
      %p46 = scmp.ne.s32.totalorder %s32, %s33
      %p47 = scmp.eq.s32.totalorder %s25, 1
      %p48 = por %p46, %p47
      %p50 = scmp.ne.s32.totalorder %s33, %s49
      %p51 = scmp.eq.s32.totalorder %s25, 0
      %p52 = por %p50, %p51
      %s54 = sadd.s32 %s53, 1
      %p57 = scmp.eq.s32.totalorder %s19, 1
      %p58 = scmp.ne.s32.totalorder %s53, %s55
      %p59 = scmp.eq.s32.totalorder %s19, 0
      %p60 = por %p58, %p59
      %p61 = scmp.ne.s32.totalorder %s53, %s55
      %p62 = scmp.eq.s32.totalorder %s24, 1
      %p63 = por %p61, %p62
      %p64 = scmp.ne.s32.totalorder %s55, %s56
      %p65 = scmp.eq.s32.totalorder %s24, 0
      %p66 = por %p64, %p65
      %p67 = scmp.ne.s32.totalorder %s55, %s56
      %p68 = scmp.eq.s32.totalorder %s25, 1
      %p69 = por %p67, %p68
      %p71 = scmp.ne.s32.totalorder %s56, %s70
      %p72 = scmp.eq.s32.totalorder %s25, 0
      %p73 = por %p71, %p72
      %s75 = sadd.s32 %s74, 1
      %p78 = scmp.eq.s32.totalorder %s19, 1
      %p79 = scmp.ne.s32.totalorder %s74, %s76
      %p80 = scmp.eq.s32.totalorder %s19, 0
      %p81 = por %p79, %p80
      %p82 = scmp.ne.s32.totalorder %s74, %s76
      %p83 = scmp.eq.s32.totalorder %s24, 1
      %p84 = por %p82, %p83
      %p85 = scmp.ne.s32.totalorder %s76, %s77
      %p86 = scmp.eq.s32.totalorder %s24, 0
      %p87 = por %p85, %p86
      %p88 = scmp.ne.s32.totalorder %s76, %s77
      %p89 = scmp.eq.s32.totalorder %s25, 1
      %p90 = por %p88, %p89
      %p92 = scmp.ne.s32.totalorder %s77, %s91
      %p93 = scmp.eq.s32.totalorder %s25, 0
      %p94 = por %p92, %p93
      %s96 = sadd.s32 %s95, 1
      %p99 = scmp.eq.s32.totalorder %s19, 1
      %p100 = scmp.ne.s32.totalorder %s95, %s97
      %p101 = scmp.eq.s32.totalorder %s19, 0
      %p102 = por %p100, %p101
      %p103 = scmp.ne.s32.totalorder %s95, %s97
      %p104 = scmp.eq.s32.totalorder %s24, 1
      %p105 = por %p103, %p104
      %p106 = scmp.ne.s32.totalorder %s97, %s98
      %p107 = scmp.eq.s32.totalorder %s24, 0
      %p108 = por %p106, %p107
      %p109 = scmp.ne.s32.totalorder %s97, %s98
      %p110 = scmp.eq.s32.totalorder %s25, 1
      %p111 = por %p109, %p110
      %p113 = scmp.ne.s32.totalorder %s98, %s112
      %p114 = scmp.eq.s32.totalorder %s25, 0
      %p115 = por %p113, %p114
      %s117 = sadd.s32 %s116, 1
      %p120 = scmp.eq.s32.totalorder %s19, 1
      %p121 = scmp.ne.s32.totalorder %s116, %s118
      %p122 = scmp.eq.s32.totalorder %s19, 0
      %p123 = por %p121, %p122
      %p124 = scmp.ne.s32.totalorder %s116, %s118
      %p125 = scmp.eq.s32.totalorder %s24, 1
      %p126 = por %p124, %p125
      %p127 = scmp.ne.s32.totalorder %s118, %s119
      %p128 = scmp.eq.s32.totalorder %s24, 0
      %p129 = por %p127, %p128
      %p130 = scmp.ne.s32.totalorder %s118, %s119
      %p131 = scmp.eq.s32.totalorder %s25, 1
      %p132 = por %p130, %p131
      %p134 = scmp.ne.s32.totalorder %s119, %s133
      %p135 = scmp.eq.s32.totalorder %s25, 0
      %p136 = por %p134, %p135
      %s138 = sadd.s32 %s137, 1
      %p141 = scmp.eq.s32.totalorder %s19, 1
      %p142 = scmp.ne.s32.totalorder %s137, %s139
      %p143 = scmp.eq.s32.totalorder %s19, 0
      %p144 = por %p142, %p143
      %p145 = scmp.ne.s32.totalorder %s137, %s139
      %p146 = scmp.eq.s32.totalorder %s24, 1
      %p147 = por %p145, %p146
      %p148 = scmp.ne.s32.totalorder %s139, %s140
      %p149 = scmp.eq.s32.totalorder %s24, 0
      %p150 = por %p148, %p149
      %p151 = scmp.ne.s32.totalorder %s139, %s140
      %p152 = scmp.eq.s32.totalorder %s25, 1
      %p153 = por %p151, %p152
      %p155 = scmp.ne.s32.totalorder %s140, %s154
      %p156 = scmp.eq.s32.totalorder %s25, 0
      %p157 = por %p155, %p156
      %s159 = sadd.s32 %s158, 1
      %p162 = scmp.eq.s32.totalorder %s19, 1
      %p163 = scmp.ne.s32.totalorder %s158, %s160
      %p164 = scmp.eq.s32.totalorder %s19, 0
      %p165 = por %p163, %p164
      %p166 = scmp.ne.s32.totalorder %s158, %s160
      %p167 = scmp.eq.s32.totalorder %s24, 1
      %p168 = por %p166, %p167
      %p169 = scmp.ne.s32.totalorder %s160, %s161
      %p170 = scmp.eq.s32.totalorder %s24, 0
      %p171 = por %p169, %p170
      %p172 = scmp.ne.s32.totalorder %s160, %s161
      %p173 = scmp.eq.s32.totalorder %s25, 1
      %p174 = por %p172, %p173
      %p176 = scmp.ne.s32.totalorder %s161, %s175
      %p177 = scmp.eq.s32.totalorder %s25, 0
      %p178 = por %p176, %p177
      %s179 = ssub.s32 %s19, %s26
      %p180 = scmp.eq.s32.totalorder %s179, 0
      %s182 = sadd.s32 %s181, 1
      %s183 = scalar_select %p180, %s181, %s182
      %p186 = pneg %p180
      %p187 = scmp.eq.s32.totalorder %s19, 1
      %p188 = por %p186, %p187
      %p189 = scmp.ne.s32.totalorder %s181, %s184
      %p190 = scmp.eq.s32.totalorder %s19, 0
      %p191 = por %p189, %p190
      %p192 = scmp.ne.s32.totalorder %s181, %s184
      %p193 = scmp.eq.s32.totalorder %s24, 1
      %p194 = por %p192, %p193
      %p195 = scmp.ne.s32.totalorder %s184, %s185
      %p196 = scmp.eq.s32.totalorder %s24, 0
      %p197 = por %p195, %p196
      %p198 = scmp.ne.s32.totalorder %s184, %s185
      %p199 = scmp.eq.s32.totalorder %s25, 1
      %p200 = por %p198, %p199
      %p202 = scmp.ne.s32.totalorder %s185, %s201
      %p203 = scmp.eq.s32.totalorder %s25, 0
      %p204 = por %p202, %p203
      %p205 = scmp.le.s32.totalorder 1, %s19
      %p206 = scmp.lt.s32.totalorder %s19, 3
      %p207 = pnand %p205, %p206
      %p208 = pneg %p207
      // Predicated region
      $region9: #{tpu_custom_call.1} parent=5 // pred_check
        _
      $region10: #{tpu_custom_call.1} parent=5 // pred_check_branch
        %210 = sbr.rel (%p207) target = $region12
      $region11: #{tpu_custom_call.1} parent=5 // pred_region
        %s211 = ssub.s32 %s19, 1
        // Predicated region
        $region13: #{tpu_custom_call.1} parent=11 // pred_check
          %p212 = pneg %p66
        $region14: #{tpu_custom_call.1} parent=11 // pred_check_branch
          %214 = sbr.rel (%p212) target = $region16
        $region15: #{tpu_custom_call.1} parent=11 // pred_region
          _
        $region16: #{tpu_custom_call.1} parent=11 // pred_fallthru
          _
        // Predicated region
        $region17: #{tpu_custom_call.1} parent=11 // pred_check
          %p215 = pneg %p87
        $region18: #{tpu_custom_call.1} parent=11 // pred_check_branch
          %217 = sbr.rel (%p215) target = $region20
        $region19: #{tpu_custom_call.1} parent=11 // pred_region
          _
        $region20: #{tpu_custom_call.1} parent=11 // pred_fallthru
          _
        // Predicated region
        $region21: #{tpu_custom_call.1} parent=11 // pred_check
          %p218 = pneg %p108
        $region22: #{tpu_custom_call.1} parent=11 // pred_check_branch
          %220 = sbr.rel (%p218) target = $region24
        $region23: #{tpu_custom_call.1} parent=11 // pred_region
          _
        $region24: #{tpu_custom_call.1} parent=11 // pred_fallthru
          _
        // Predicated region
        $region25: #{tpu_custom_call.1} parent=11 // pred_check
          %p221 = pneg %p129
        $region26: #{tpu_custom_call.1} parent=11 // pred_check_branch
          %223 = sbr.rel (%p221) target = $region28
        $region27: #{tpu_custom_call.1} parent=11 // pred_region
          _
        $region28: #{tpu_custom_call.1} parent=11 // pred_fallthru
          _
        // Predicated region
        $region29: #{tpu_custom_call.1} parent=11 // pred_check
          %p224 = pneg %p150
        $region30: #{tpu_custom_call.1} parent=11 // pred_check_branch
          %226 = sbr.rel (%p224) target = $region32
        $region31: #{tpu_custom_call.1} parent=11 // pred_region
          _
        $region32: #{tpu_custom_call.1} parent=11 // pred_fallthru
          _
        // Predicated region
        $region33: #{tpu_custom_call.1} parent=11 // pred_check
          %p227 = pneg %p171
        $region34: #{tpu_custom_call.1} parent=11 // pred_check_branch
          %229 = sbr.rel (%p227) target = $region36
        $region35: #{tpu_custom_call.1} parent=11 // pred_region
          _
        $region36: #{tpu_custom_call.1} parent=11 // pred_fallthru
          _
      $region12: #{tpu_custom_call.1} parent=5 // pred_fallthru
        _
      %p230 = scmp.lt.s32.totalorder %s19, 2
      // Predicated region
      $region37: #{tpu_custom_call.1} parent=5 // pred_check
        %p231 = pneg %p230
      $region38: #{tpu_custom_call.1} parent=5 // pred_check_branch
        %233 = sbr.rel (%p231) target = $region40
      $region39: #{tpu_custom_call.1} parent=5 // pred_region
        // Predicated region
        $region41: #{tpu_custom_call.1} parent=39 // pred_check
          %p234 = pneg %p39
        $region42: #{tpu_custom_call.1} parent=39 // pred_check_branch
          %236 = sbr.rel (%p234) target = $region44
        $region43: #{tpu_custom_call.1} parent=39 // pred_region
          %s237 = sand.u32 %s29, 1
          %s238 = scalar_lea.sflag [#allocation4], %s237
          %s239 = sand.u32 %s29, 1
          %s240 = smul.addr %s239, 256
          %s241 = scalar_lea.vmem [#allocation3], %s240
          %243 = vsyncadd %s238, 0
          %s244 = smul.addr %s19, 32
          %s245 = smul.addr %s244, 8
          %s246 = scalar_lea.hbm %s0, %s245
          %s247 = sshll.u32 %s246, 4
          %s248 = int_to_ptr.hbm [resolvable:$true] %s247
          %s249 = sshll.u32 %s241, 4
          %s250 = int_to_ptr.vmem [resolvable:$true] %s249
          %255 = dma.hbm_to_vmem [thread:$0]  %s248, 4096, %s250, %s238, 128, 128, 8
        $region44: #{tpu_custom_call.1} parent=39 // pred_fallthru
          _
      $region40: #{tpu_custom_call.1} parent=5 // pred_fallthru
        _
      %p256 = scmp.le.s32.totalorder 1, %s19
      %p257 = scmp.lt.s32.totalorder %s19, 3
      %p258 = pnand %p256, %p257
      %p259 = pneg %p258
      // Predicated region
      $region45: #{tpu_custom_call.1} parent=5 // pred_check
        _
      $region46: #{tpu_custom_call.1} parent=5 // pred_check_branch
        %261 = sbr.rel (%p258) target = $region48
      $region47: #{tpu_custom_call.1} parent=5 // pred_region
        %s262 = ssub.s32 %s19, 1
        %s263 = sand.u32 %s32, 1
        %s264 = scalar_lea.sflag [#allocation4], %s263
        %s265 = sand.u32 %s32, 1
        %s266 = smul.addr %s265, 256
        %s267 = scalar_lea.vmem [#allocation3], %s266
        // Predicated region
        $region49: #{tpu_custom_call.1} parent=47 // pred_check
          %p268 = pneg %p45
        $region50: #{tpu_custom_call.1} parent=47 // pred_check_branch
          %270 = sbr.rel (%p268) target = $region52
        $region51: #{tpu_custom_call.1} parent=47 // pred_region
          %272 = dma.done %s264, 4096
        $region52: #{tpu_custom_call.1} parent=47 // pred_fallthru
          _
        %s273 = sand.u32 %s32, 1
        %s274 = scalar_lea.sflag [#allocation4], %s273
        %s275 = sand.u32 %s32, 1
        %s276 = smul.addr %s275, 256
        %s277 = scalar_lea.vmem [#allocation3], %s276
        %p278 = pneg %p45
        %p279 = pneg %p42
        %p280 = pneg %p66
        %p281 = pneg %p63
        %p282 = pneg %p87
        %p283 = pneg %p84
        %p284 = pneg %p108
        %p285 = pneg %p105
        %p286 = pneg %p129
        %p287 = pneg %p126
        %p288 = pneg %p150
        %p289 = pneg %p147
        %p290 = pneg %p171
        %p291 = pneg %p168
        %p292 = pneg %p197
        %p293 = pneg %p194
        %s294 = sand.u32 %s184, 1
        %s295 = scalar_lea.sflag [#allocation5], %s294
        %s296 = sand.u32 %s184, 1
        %s297 = smul.addr %s296, 256
        %s298 = scalar_lea.vmem [#allocation6], %s297
        %v299 = vld [vmem:[%s267] sm:$0xff]
        %v300 = vld [vmem:[%s267 + $0x8] sm:$0xff]
        %v301 = vld [vmem:[%s267 + $0x10] sm:$0xff]
        %v302 = vld [vmem:[%s267 + $0x18] sm:$0xff]
        %v303 = vld [vmem:[%s267 + $0x20] sm:$0xff]
        %v304 = vld [vmem:[%s267 + $0x28] sm:$0xff]
        %v305 = vld [vmem:[%s267 + $0x30] sm:$0xff]
        %v306 = vld [vmem:[%s267 + $0x38] sm:$0xff]
        %v307 = vld [vmem:[%s267 + $0x40] sm:$0xff]
        %v308 = vld [vmem:[%s267 + $0x48] sm:$0xff]
        %v309 = vld [vmem:[%s267 + $0x50] sm:$0xff]
        %v310 = vld [vmem:[%s267 + $0x58] sm:$0xff]
        %v311 = vld [vmem:[%s267 + $0x60] sm:$0xff]
        %v312 = vld [vmem:[%s267 + $0x68] sm:$0xff]
        %v313 = vld [vmem:[%s267 + $0x70] sm:$0xff]
        %v314 = vld [vmem:[%s267 + $0x78] sm:$0xff]
        %v315 = vld [vmem:[%s267 + $0x80] sm:$0xff]
        %v316 = vld [vmem:[%s267 + $0x88] sm:$0xff]
        %v317 = vld [vmem:[%s267 + $0x90] sm:$0xff]
        %v318 = vld [vmem:[%s267 + $0x98] sm:$0xff]
        %v319 = vld [vmem:[%s267 + $0xa0] sm:$0xff]
        %v320 = vld [vmem:[%s267 + $0xa8] sm:$0xff]
        %v321 = vld [vmem:[%s267 + $0xb0] sm:$0xff]
        %v322 = vld [vmem:[%s267 + $0xb8] sm:$0xff]
        %v323 = vld [vmem:[%s267 + $0xc0] sm:$0xff]
        %v324 = vld [vmem:[%s267 + $0xc8] sm:$0xff]
        %v325 = vld [vmem:[%s267 + $0xd0] sm:$0xff]
        %v326 = vld [vmem:[%s267 + $0xd8] sm:$0xff]
        %v327 = vld [vmem:[%s267 + $0xe0] sm:$0xff]
        %v328 = vld [vmem:[%s267 + $0xe8] sm:$0xff]
        %v329 = vld [vmem:[%s267 + $0xf0] sm:$0xff]
        %v330 = vld [vmem:[%s267 + $0xf8] sm:$0xff]
        %v331 = vld [vmem:[%s1] sm:$0xff]
        %v332 = vld [vmem:[%s1 + $0x8] sm:$0xff]
        %v333 = vld [vmem:[%s1 + $0x10] sm:$0xff]
        %v334 = vld [vmem:[%s1 + $0x18] sm:$0xff]
        %v335 = vld [vmem:[%s2] sm:$0x1]
        %v337 = vperm.slane %v335, 0
        %vm339 = vcmask 261120
        %v341 = vsel %vm339, %v299, 0
        %v344 = vsel %vm339, %v300, 0
        %v347 = vsel %vm339, %v301, 0
        %v350 = vsel %vm339, %v302, 0
        %v353 = vsel %vm339, %v303, 0
        %v356 = vsel %vm339, %v304, 0
        %v359 = vsel %vm339, %v305, 0
        %v362 = vsel %vm339, %v306, 0
        %v365 = vsel %vm339, %v307, 0
        %v368 = vsel %vm339, %v308, 0
        %v371 = vsel %vm339, %v309, 0
        %v374 = vsel %vm339, %v310, 0
        %v377 = vsel %vm339, %v311, 0
        %v380 = vsel %vm339, %v312, 0
        %v383 = vsel %vm339, %v313, 0
        %v386 = vsel %vm339, %v314, 0
        %v389 = vsel %vm339, %v315, 0
        %v392 = vsel %vm339, %v316, 0
        %v395 = vsel %vm339, %v317, 0
        %v398 = vsel %vm339, %v318, 0
        %v401 = vsel %vm339, %v319, 0
        %v404 = vsel %vm339, %v320, 0
        %v407 = vsel %vm339, %v321, 0
        %v410 = vsel %vm339, %v322, 0
        %v413 = vsel %vm339, %v323, 0
        %v416 = vsel %vm339, %v324, 0
        %v419 = vsel %vm339, %v325, 0
        %v422 = vsel %vm339, %v326, 0
        %v425 = vsel %vm339, %v327, 0
        %v428 = vsel %vm339, %v328, 0
        %v431 = vsel %vm339, %v329, 0
        %v434 = vsel %vm339, %v330, 0
        %436 = vmatpush.msra.mxu0 0.0
        %437 = vmatpush.msra.mxu0 0.0
        %438 = vmatpush.msra.mxu0 0.0
        %439 = vmatpush.msra.mxu0 0.0
        %440 = vmatpush.msra.mxu0 0.0
        %441 = vmatpush.msra.mxu0 0.0
        %442 = vmatpush.msra.mxu0 0.0
        %443 = vmatpush.msra.mxu0 0.0
        %444 = vmatpush.msra.mxu0 0.0
        %445 = vmatpush.msra.mxu0 0.0
        %446 = vmatpush.msra.mxu0 0.0
        %447 = vmatpush.msra.mxu0 0.0
        %448 = vmatpush.msra.mxu0 %v334
        %449 = vmatpush.msra.mxu0 %v333
        %450 = vmatpush.msra.mxu0 %v332
        %451 = vmatpush.msra.mxu0 %v331
        %452 = vmatmul.f32.gmra.mxu0 %v341
        %v453 = vpop.f32.mrf.mxu0
        %v454 = vadd.f32 %v337, %v453
        %455 = vmatmul.f32.gmra.mxu0 %v344
        %v456 = vpop.f32.mrf.mxu0
        %v457 = vadd.f32 %v337, %v456
        %458 = vmatmul.f32.gmra.mxu0 %v347
        %v459 = vpop.f32.mrf.mxu0
        %v460 = vadd.f32 %v337, %v459
        %461 = vmatmul.f32.gmra.mxu0 %v350
        %v462 = vpop.f32.mrf.mxu0
        %v463 = vadd.f32 %v337, %v462
        %464 = vmatmul.f32.gmra.mxu0 %v353
        %v465 = vpop.f32.mrf.mxu0
        %v466 = vadd.f32 %v337, %v465
        %467 = vmatmul.f32.gmra.mxu0 %v356
        %v468 = vpop.f32.mrf.mxu0
        %v469 = vadd.f32 %v337, %v468
        %470 = vmatmul.f32.gmra.mxu0 %v359
        %v471 = vpop.f32.mrf.mxu0
        %v472 = vadd.f32 %v337, %v471
        %473 = vmatmul.f32.gmra.mxu0 %v362
        %v474 = vpop.f32.mrf.mxu0
        %v475 = vadd.f32 %v337, %v474
        %476 = vmatmul.f32.gmra.mxu0 %v365
        %v477 = vpop.f32.mrf.mxu0
        %v478 = vadd.f32 %v337, %v477
        %479 = vmatmul.f32.gmra.mxu0 %v368
        %v480 = vpop.f32.mrf.mxu0
        %v481 = vadd.f32 %v337, %v480
        %482 = vmatmul.f32.gmra.mxu0 %v371
        %v483 = vpop.f32.mrf.mxu0
        %v484 = vadd.f32 %v337, %v483
        %485 = vmatmul.f32.gmra.mxu0 %v374
        %v486 = vpop.f32.mrf.mxu0
        %v487 = vadd.f32 %v337, %v486
        %488 = vmatmul.f32.gmra.mxu0 %v377
        %v489 = vpop.f32.mrf.mxu0
        %v490 = vadd.f32 %v337, %v489
        %491 = vmatmul.f32.gmra.mxu0 %v380
        %v492 = vpop.f32.mrf.mxu0
        %v493 = vadd.f32 %v337, %v492
        %494 = vmatmul.f32.gmra.mxu0 %v383
        %v495 = vpop.f32.mrf.mxu0
        %v496 = vadd.f32 %v337, %v495
        %497 = vmatmul.f32.gmra.mxu0 %v386
        %v498 = vpop.f32.mrf.mxu0
        %v499 = vadd.f32 %v337, %v498
        %500 = vmatmul.f32.gmra.mxu0 %v389
        %v501 = vpop.f32.mrf.mxu0
        %v502 = vadd.f32 %v337, %v501
        %503 = vmatmul.f32.gmra.mxu0 %v392
        %v504 = vpop.f32.mrf.mxu0
        %v505 = vadd.f32 %v337, %v504
        %506 = vmatmul.f32.gmra.mxu0 %v395
        %v507 = vpop.f32.mrf.mxu0
        %v508 = vadd.f32 %v337, %v507
        %509 = vmatmul.f32.gmra.mxu0 %v398
        %v510 = vpop.f32.mrf.mxu0
        %v511 = vadd.f32 %v337, %v510
        %512 = vmatmul.f32.gmra.mxu0 %v401
        %v513 = vpop.f32.mrf.mxu0
        %v514 = vadd.f32 %v337, %v513
        %515 = vmatmul.f32.gmra.mxu0 %v404
        %v516 = vpop.f32.mrf.mxu0
        %v517 = vadd.f32 %v337, %v516
        %518 = vmatmul.f32.gmra.mxu0 %v407
        %v519 = vpop.f32.mrf.mxu0
        %v520 = vadd.f32 %v337, %v519
        %521 = vmatmul.f32.gmra.mxu0 %v410
        %v522 = vpop.f32.mrf.mxu0
        %v523 = vadd.f32 %v337, %v522
        %524 = vmatmul.f32.gmra.mxu0 %v413
        %v525 = vpop.f32.mrf.mxu0
        %v526 = vadd.f32 %v337, %v525
        %527 = vmatmul.f32.gmra.mxu0 %v416
        %v528 = vpop.f32.mrf.mxu0
        %v529 = vadd.f32 %v337, %v528
        %530 = vmatmul.f32.gmra.mxu0 %v419
        %v531 = vpop.f32.mrf.mxu0
        %v532 = vadd.f32 %v337, %v531
        %533 = vmatmul.f32.gmra.mxu0 %v422
        %v534 = vpop.f32.mrf.mxu0
        %v535 = vadd.f32 %v337, %v534
        %536 = vmatmul.f32.gmra.mxu0 %v425
        %v537 = vpop.f32.mrf.mxu0
        %v538 = vadd.f32 %v337, %v537
        %539 = vmatmul.f32.gmra.mxu0 %v428
        %v540 = vpop.f32.mrf.mxu0
        %v541 = vadd.f32 %v337, %v540
        %542 = vmatmul.f32.gmra.mxu0 %v431
        %v543 = vpop.f32.mrf.mxu0
        %v544 = vadd.f32 %v337, %v543
        %545 = vmatmul.f32.gmra.mxu0 %v434
        %v546 = vpop.f32.mrf.mxu0
        %v547 = vadd.f32 %v337, %v546
        %548 = vdwg.mxu0
        %v549 = vmax.f32 %v454, 0.0
        %v550 = vmax.f32 %v457, 0.0
        %v551 = vmax.f32 %v460, 0.0
        %v552 = vmax.f32 %v463, 0.0
        %v553 = vmax.f32 %v466, 0.0
        %v554 = vmax.f32 %v469, 0.0
        %v555 = vmax.f32 %v472, 0.0
        %v556 = vmax.f32 %v475, 0.0
        %v557 = vmax.f32 %v478, 0.0
        %v558 = vmax.f32 %v481, 0.0
        %v559 = vmax.f32 %v484, 0.0
        %v560 = vmax.f32 %v487, 0.0
        %v561 = vmax.f32 %v490, 0.0
        %v562 = vmax.f32 %v493, 0.0
        %v563 = vmax.f32 %v496, 0.0
        %v564 = vmax.f32 %v499, 0.0
        %v565 = vmax.f32 %v502, 0.0
        %v566 = vmax.f32 %v505, 0.0
        %v567 = vmax.f32 %v508, 0.0
        %v568 = vmax.f32 %v511, 0.0
        %v569 = vmax.f32 %v514, 0.0
        %v570 = vmax.f32 %v517, 0.0
        %v571 = vmax.f32 %v520, 0.0
        %v572 = vmax.f32 %v523, 0.0
        %v573 = vmax.f32 %v526, 0.0
        %v574 = vmax.f32 %v529, 0.0
        %v575 = vmax.f32 %v532, 0.0
        %v576 = vmax.f32 %v535, 0.0
        %v577 = vmax.f32 %v538, 0.0
        %v578 = vmax.f32 %v541, 0.0
        %v579 = vmax.f32 %v544, 0.0
        %v580 = vmax.f32 %v547, 0.0
        %581 = vst [vmem:[#allocation2] sm:$0xff] 0.0
        %582 = vst [vmem:[#allocation2 + $0x8] sm:$0xff] 0.0
        %583 = vst [vmem:[#allocation2 + $0x10] sm:$0x3] 0.0
        %584 = vst [vmem:[#allocation2 + $0x18] sm:$0xff] 0.0
        %585 = vst [vmem:[#allocation2 + $0x20] sm:$0xff] 0.0
        %586 = vst [vmem:[#allocation2 + $0x28] sm:$0x3] 0.0
        %587 = vst [vmem:[#allocation2 + $0x30] sm:$0xff] 0.0
        %588 = vst [vmem:[#allocation2 + $0x38] sm:$0xff] 0.0
        %589 = vst [vmem:[#allocation2 + $0x40] sm:$0x3] 0.0
        %590 = vst [vmem:[#allocation2 + $0x48] sm:$0xff] 0.0
        %591 = vst [vmem:[#allocation2 + $0x50] sm:$0xff] 0.0
        %592 = vst [vmem:[#allocation2 + $0x58] sm:$0x3] 0.0
        %593 = vst [vmem:[#allocation2 + $0x60] sm:$0xff] 0.0
        %594 = vst [vmem:[#allocation2 + $0x68] sm:$0xff] 0.0
        %595 = vst [vmem:[#allocation2 + $0x70] sm:$0x3] 0.0
        %596 = vst [vmem:[#allocation2 + $0x78] sm:$0xff] 0.0
        %597 = vst [vmem:[#allocation2 + $0x80] sm:$0xff] 0.0
        %598 = vst [vmem:[#allocation2 + $0x88] sm:$0x3] 0.0
        %599 = vst [vmem:[#allocation2 + $0x90] sm:$0xff] 0.0
        %600 = vst [vmem:[#allocation2 + $0x98] sm:$0xff] 0.0
        %601 = vst [vmem:[#allocation2 + $0xa0] sm:$0x3] 0.0
        %602 = vst [vmem:[#allocation2 + $0xa8] sm:$0xff] 0.0
        %603 = vst [vmem:[#allocation2 + $0xb0] sm:$0xff] 0.0
        %604 = vst [vmem:[#allocation2 + $0xb8] sm:$0x3] 0.0
        %605 = vst [vmem:[#allocation2 + $0xc0] sm:$0xff] 0.0
        %606 = vst [vmem:[#allocation2 + $0xc8] sm:$0xff] 0.0
        %607 = vst [vmem:[#allocation2 + $0xd0] sm:$0x3] 0.0
        %608 = vst [vmem:[#allocation2 + $0xd8] sm:$0xff] 0.0
        %609 = vst [vmem:[#allocation2 + $0xe0] sm:$0xff] 0.0
        %610 = vst [vmem:[#allocation2 + $0xe8] sm:$0x3] 0.0
        %611 = vst [vmem:[#allocation2 + $0xf0] sm:$0xff] 0.0
        %612 = vst [vmem:[#allocation2 + $0xf8] sm:$0xff] 0.0
        %613 = vst [vmem:[#allocation2 + $0x100] sm:$0x3] 0.0
        %614 = vst [vmem:[#allocation2 + $0x108] sm:$0xff] 0.0
        %615 = vst [vmem:[#allocation2 + $0x110] sm:$0xff] 0.0
        %616 = vst [vmem:[#allocation2 + $0x118] sm:$0x3] 0.0
        %617 = vst [vmem:[#allocation2 + $0x120] sm:$0xff] 0.0
        %618 = vst [vmem:[#allocation2 + $0x128] sm:$0xff] 0.0
        %619 = vst [vmem:[#allocation2 + $0x130] sm:$0x3] 0.0
        %620 = vst [vmem:[#allocation2 + $0x138] sm:$0xff] 0.0
        %621 = vst [vmem:[#allocation2 + $0x140] sm:$0xff] 0.0
        %622 = vst [vmem:[#allocation2 + $0x148] sm:$0x3] 0.0
        %623 = vst [vmem:[#allocation2 + $0x150] sm:$0xff] 0.0
        %624 = vst [vmem:[#allocation2 + $0x158] sm:$0xff] 0.0
        %625 = vst [vmem:[#allocation2 + $0x160] sm:$0x3] 0.0
        %626 = vst [vmem:[#allocation2 + $0x168] sm:$0xff] 0.0
        %627 = vst [vmem:[#allocation2 + $0x170] sm:$0xff] 0.0
        %628 = vst [vmem:[#allocation2 + $0x178] sm:$0x3] 0.0
        %629 = vst [vmem:[#allocation2 + $0x180] sm:$0xff] 0.0
        %630 = vst [vmem:[#allocation2 + $0x188] sm:$0xff] 0.0
        %631 = vst [vmem:[#allocation2 + $0x190] sm:$0x3] 0.0
        %632 = vst [vmem:[#allocation2 + $0x198] sm:$0xff] 0.0
        %633 = vst [vmem:[#allocation2 + $0x1a0] sm:$0xff] 0.0
        %634 = vst [vmem:[#allocation2 + $0x1a8] sm:$0x3] 0.0
        %s635 = scalar_lea.vmem [#allocation2], 24
        %636 = vst [vmem:[%s635 + $0x1] sm:$0xff] %v549
        %637 = vst [vmem:[%s635 + $0x9] sm:$0xff] %v550
        %638 = vst [vmem:[%s635 + $0x19] sm:$0xff] %v551
        %639 = vst [vmem:[%s635 + $0x21] sm:$0xff] %v552
        %640 = vst [vmem:[%s635 + $0x31] sm:$0xff] %v553
        %641 = vst [vmem:[%s635 + $0x39] sm:$0xff] %v554
        %642 = vst [vmem:[%s635 + $0x49] sm:$0xff] %v555
        %643 = vst [vmem:[%s635 + $0x51] sm:$0xff] %v556
        %644 = vst [vmem:[%s635 + $0x61] sm:$0xff] %v557
        %645 = vst [vmem:[%s635 + $0x69] sm:$0xff] %v558
        %646 = vst [vmem:[%s635 + $0x79] sm:$0xff] %v559
        %647 = vst [vmem:[%s635 + $0x81] sm:$0xff] %v560
        %648 = vst [vmem:[%s635 + $0x91] sm:$0xff] %v561
        %649 = vst [vmem:[%s635 + $0x99] sm:$0xff] %v562
        %650 = vst [vmem:[%s635 + $0xa9] sm:$0xff] %v563
        %651 = vst [vmem:[%s635 + $0xb1] sm:$0xff] %v564
        %652 = vst [vmem:[%s635 + $0xc1] sm:$0xff] %v565
        %653 = vst [vmem:[%s635 + $0xc9] sm:$0xff] %v566
        %654 = vst [vmem:[%s635 + $0xd9] sm:$0xff] %v567
        %655 = vst [vmem:[%s635 + $0xe1] sm:$0xff] %v568
        %656 = vst [vmem:[%s635 + $0xf1] sm:$0xff] %v569
        %657 = vst [vmem:[%s635 + $0xf9] sm:$0xff] %v570
        %658 = vst [vmem:[%s635 + $0x109] sm:$0xff] %v571
        %659 = vst [vmem:[%s635 + $0x111] sm:$0xff] %v572
        %660 = vst [vmem:[%s635 + $0x121] sm:$0xff] %v573
        %661 = vst [vmem:[%s635 + $0x129] sm:$0xff] %v574
        %662 = vst [vmem:[%s635 + $0x139] sm:$0xff] %v575
        %663 = vst [vmem:[%s635 + $0x141] sm:$0xff] %v576
        %664 = vst [vmem:[%s635 + $0x151] sm:$0xff] %v577
        %665 = vst [vmem:[%s635 + $0x159] sm:$0xff] %v578
        %666 = vst [vmem:[%s635 + $0x169] sm:$0xff] %v579
        %667 = vst [vmem:[%s635 + $0x171] sm:$0xff] %v580
        %v668 = vld [vmem:[#allocation2] sm:$0xff]
        %v669 = vld [vmem:[#allocation2 + $0x8] sm:$0xff]
        %v670 = vld [vmem:[#allocation2 + $0x18] sm:$0xff]
        %v671 = vld [vmem:[#allocation2 + $0x20] sm:$0xff]
        %v672 = vld [vmem:[#allocation2 + $0x30] sm:$0xff]
        %v673 = vld [vmem:[#allocation2 + $0x38] sm:$0xff]
        %v674 = vld [vmem:[#allocation2 + $0x48] sm:$0xff]
        %v675 = vld [vmem:[#allocation2 + $0x50] sm:$0xff]
        %v676 = vld [vmem:[#allocation2 + $0x60] sm:$0xff]
        %v677 = vld [vmem:[#allocation2 + $0x68] sm:$0xff]
        %v678 = vld [vmem:[#allocation2 + $0x78] sm:$0xff]
        %v679 = vld [vmem:[#allocation2 + $0x80] sm:$0xff]
        %v680 = vld [vmem:[#allocation2 + $0x90] sm:$0xff]
        %v681 = vld [vmem:[#allocation2 + $0x98] sm:$0xff]
        %v682 = vld [vmem:[#allocation2 + $0xa8] sm:$0xff]
        %v683 = vld [vmem:[#allocation2 + $0xb0] sm:$0xff]
        %v684 = vld [vmem:[#allocation2 + $0xc0] sm:$0xff]
        %v685 = vld [vmem:[#allocation2 + $0xc8] sm:$0xff]
        %v686 = vld [vmem:[#allocation2 + $0xd8] sm:$0xff]
        %v687 = vld [vmem:[#allocation2 + $0xe0] sm:$0xff]
        %v688 = vld [vmem:[#allocation2 + $0xf0] sm:$0xff]
        %v689 = vld [vmem:[#allocation2 + $0xf8] sm:$0xff]
        %v690 = vld [vmem:[#allocation2 + $0x108] sm:$0xff]
        %v691 = vld [vmem:[#allocation2 + $0x110] sm:$0xff]
        %v692 = vld [vmem:[#allocation2 + $0x120] sm:$0xff]
        %v693 = vld [vmem:[#allocation2 + $0x128] sm:$0xff]
        %v694 = vld [vmem:[#allocation2 + $0x138] sm:$0xff]
        %v695 = vld [vmem:[#allocation2 + $0x140] sm:$0xff]
        %v696 = vld [vmem:[#allocation2 + $0x150] sm:$0xff]
        %v697 = vld [vmem:[#allocation2 + $0x158] sm:$0xff]
        %v698 = vld [vmem:[#allocation2 + $0x168] sm:$0xff]
        %v699 = vld [vmem:[#allocation2 + $0x170] sm:$0xff]
        %v700 = vld [vmem:[%s3] sm:$0x1]
        %v701 = vperm.slane %v700, 0
        %v702 = vmul.f32 %v668, %v701
        %v703 = vmul.f32 %v669, %v701
        %v704 = vmul.f32 %v670, %v701
        %v705 = vmul.f32 %v671, %v701
        %v706 = vmul.f32 %v672, %v701
        %v707 = vmul.f32 %v673, %v701
        %v708 = vmul.f32 %v674, %v701
        %v709 = vmul.f32 %v675, %v701
        %v710 = vmul.f32 %v676, %v701
        %v711 = vmul.f32 %v677, %v701
        %v712 = vmul.f32 %v678, %v701
        %v713 = vmul.f32 %v679, %v701
        %v714 = vmul.f32 %v680, %v701
        %v715 = vmul.f32 %v681, %v701
        %v716 = vmul.f32 %v682, %v701
        %v717 = vmul.f32 %v683, %v701
        %v718 = vmul.f32 %v684, %v701
        %v719 = vmul.f32 %v685, %v701
        %v720 = vmul.f32 %v686, %v701
        %v721 = vmul.f32 %v687, %v701
        %v722 = vmul.f32 %v688, %v701
        %v723 = vmul.f32 %v689, %v701
        %v724 = vmul.f32 %v690, %v701
        %v725 = vmul.f32 %v691, %v701
        %v726 = vmul.f32 %v692, %v701
        %v727 = vmul.f32 %v693, %v701
        %v728 = vmul.f32 %v694, %v701
        %v729 = vmul.f32 %v695, %v701
        %v730 = vmul.f32 %v696, %v701
        %v731 = vmul.f32 %v697, %v701
        %v732 = vmul.f32 %v698, %v701
        %v733 = vmul.f32 %v699, %v701
        %v734 = vadd.f32 %v702, 0.0
        %v735 = vadd.f32 %v703, 0.0
        %v736 = vadd.f32 %v704, 0.0
        %v737 = vadd.f32 %v705, 0.0
        %v738 = vadd.f32 %v706, 0.0
        %v739 = vadd.f32 %v707, 0.0
        %v740 = vadd.f32 %v708, 0.0
        %v741 = vadd.f32 %v709, 0.0
        %v742 = vadd.f32 %v710, 0.0
        %v743 = vadd.f32 %v711, 0.0
        %v744 = vadd.f32 %v712, 0.0
        %v745 = vadd.f32 %v713, 0.0
        %v746 = vadd.f32 %v714, 0.0
        %v747 = vadd.f32 %v715, 0.0
        %v748 = vadd.f32 %v716, 0.0
        %v749 = vadd.f32 %v717, 0.0
        %v750 = vadd.f32 %v718, 0.0
        %v751 = vadd.f32 %v719, 0.0
        %v752 = vadd.f32 %v720, 0.0
        %v753 = vadd.f32 %v721, 0.0
        %v754 = vadd.f32 %v722, 0.0
        %v755 = vadd.f32 %v723, 0.0
        %v756 = vadd.f32 %v724, 0.0
        %v757 = vadd.f32 %v725, 0.0
        %v758 = vadd.f32 %v726, 0.0
        %v759 = vadd.f32 %v727, 0.0
        %v760 = vadd.f32 %v728, 0.0
        %v761 = vadd.f32 %v729, 0.0
        %v762 = vadd.f32 %v730, 0.0
        %v763 = vadd.f32 %v731, 0.0
        %v764 = vadd.f32 %v732, 0.0
        %v765 = vadd.f32 %v733, 0.0
        %v766 = vld [vmem:[#allocation2 + $0x1] sm:$0xff]
        %v767 = vld [vmem:[#allocation2 + $0x9] sm:$0xff]
        %v768 = vld [vmem:[#allocation2 + $0x19] sm:$0xff]
        %v769 = vld [vmem:[#allocation2 + $0x21] sm:$0xff]
        %v770 = vld [vmem:[#allocation2 + $0x31] sm:$0xff]
        %v771 = vld [vmem:[#allocation2 + $0x39] sm:$0xff]
        %v772 = vld [vmem:[#allocation2 + $0x49] sm:$0xff]
        %v773 = vld [vmem:[#allocation2 + $0x51] sm:$0xff]
        %v774 = vld [vmem:[#allocation2 + $0x61] sm:$0xff]
        %v775 = vld [vmem:[#allocation2 + $0x69] sm:$0xff]
        %v776 = vld [vmem:[#allocation2 + $0x79] sm:$0xff]
        %v777 = vld [vmem:[#allocation2 + $0x81] sm:$0xff]
        %v778 = vld [vmem:[#allocation2 + $0x91] sm:$0xff]
        %v779 = vld [vmem:[#allocation2 + $0x99] sm:$0xff]
        %v780 = vld [vmem:[#allocation2 + $0xa9] sm:$0xff]
        %v781 = vld [vmem:[#allocation2 + $0xb1] sm:$0xff]
        %v782 = vld [vmem:[#allocation2 + $0xc1] sm:$0xff]
        %v783 = vld [vmem:[#allocation2 + $0xc9] sm:$0xff]
        %v784 = vld [vmem:[#allocation2 + $0xd9] sm:$0xff]
        %v785 = vld [vmem:[#allocation2 + $0xe1] sm:$0xff]
        %v786 = vld [vmem:[#allocation2 + $0xf1] sm:$0xff]
        %v787 = vld [vmem:[#allocation2 + $0xf9] sm:$0xff]
        %v788 = vld [vmem:[#allocation2 + $0x109] sm:$0xff]
        %v789 = vld [vmem:[#allocation2 + $0x111] sm:$0xff]
        %v790 = vld [vmem:[#allocation2 + $0x121] sm:$0xff]
        %v791 = vld [vmem:[#allocation2 + $0x129] sm:$0xff]
        %v792 = vld [vmem:[#allocation2 + $0x139] sm:$0xff]
        %v793 = vld [vmem:[#allocation2 + $0x141] sm:$0xff]
        %v794 = vld [vmem:[#allocation2 + $0x151] sm:$0xff]
        %v795 = vld [vmem:[#allocation2 + $0x159] sm:$0xff]
        %v796 = vld [vmem:[#allocation2 + $0x169] sm:$0xff]
        %v797 = vld [vmem:[#allocation2 + $0x171] sm:$0xff]
        %v798 = vld [vmem:[%s3 + $0x1] sm:$0x1]
        %v799 = vperm.slane %v798, 0
        %v800 = vmul.f32 %v766, %v799
        %v801 = vmul.f32 %v767, %v799
        %v802 = vmul.f32 %v768, %v799
        %v803 = vmul.f32 %v769, %v799
        %v804 = vmul.f32 %v770, %v799
        %v805 = vmul.f32 %v771, %v799
        %v806 = vmul.f32 %v772, %v799
        %v807 = vmul.f32 %v773, %v799
        %v808 = vmul.f32 %v774, %v799
        %v809 = vmul.f32 %v775, %v799
        %v810 = vmul.f32 %v776, %v799
        %v811 = vmul.f32 %v777, %v799
        %v812 = vmul.f32 %v778, %v799
        %v813 = vmul.f32 %v779, %v799
        %v814 = vmul.f32 %v780, %v799
        %v815 = vmul.f32 %v781, %v799
        %v816 = vmul.f32 %v782, %v799
        %v817 = vmul.f32 %v783, %v799
        %v818 = vmul.f32 %v784, %v799
        %v819 = vmul.f32 %v785, %v799
        %v820 = vmul.f32 %v786, %v799
        %v821 = vmul.f32 %v787, %v799
        %v822 = vmul.f32 %v788, %v799
        %v823 = vmul.f32 %v789, %v799
        %v824 = vmul.f32 %v790, %v799
        %v825 = vmul.f32 %v791, %v799
        %v826 = vmul.f32 %v792, %v799
        %v827 = vmul.f32 %v793, %v799
        %v828 = vmul.f32 %v794, %v799
        %v829 = vmul.f32 %v795, %v799
        %v830 = vmul.f32 %v796, %v799
        %v831 = vmul.f32 %v797, %v799
        %v832 = vadd.f32 %v734, %v800
        %v833 = vadd.f32 %v735, %v801
        %v834 = vadd.f32 %v736, %v802
        %v835 = vadd.f32 %v737, %v803
        %v836 = vadd.f32 %v738, %v804
        %v837 = vadd.f32 %v739, %v805
        %v838 = vadd.f32 %v740, %v806
        %v839 = vadd.f32 %v741, %v807
        %v840 = vadd.f32 %v742, %v808
        %v841 = vadd.f32 %v743, %v809
        %v842 = vadd.f32 %v744, %v810
        %v843 = vadd.f32 %v745, %v811
        %v844 = vadd.f32 %v746, %v812
        %v845 = vadd.f32 %v747, %v813
        %v846 = vadd.f32 %v748, %v814
        %v847 = vadd.f32 %v749, %v815
        %v848 = vadd.f32 %v750, %v816
        %v849 = vadd.f32 %v751, %v817
        %v850 = vadd.f32 %v752, %v818
        %v851 = vadd.f32 %v753, %v819
        %v852 = vadd.f32 %v754, %v820
        %v853 = vadd.f32 %v755, %v821
        %v854 = vadd.f32 %v756, %v822
        %v855 = vadd.f32 %v757, %v823
        %v856 = vadd.f32 %v758, %v824
        %v857 = vadd.f32 %v759, %v825
        %v858 = vadd.f32 %v760, %v826
        %v859 = vadd.f32 %v761, %v827
        %v860 = vadd.f32 %v762, %v828
        %v861 = vadd.f32 %v763, %v829
        %v862 = vadd.f32 %v764, %v830
        %v863 = vadd.f32 %v765, %v831
        %v864 = vld [vmem:[#allocation2 + $0x2] sm:$0xff]
        %v865 = vld [vmem:[#allocation2 + $0xa] sm:$0xff]
        %v866 = vld [vmem:[#allocation2 + $0x1a] sm:$0xff]
        %v867 = vld [vmem:[#allocation2 + $0x22] sm:$0xff]
        %v868 = vld [vmem:[#allocation2 + $0x32] sm:$0xff]
        %v869 = vld [vmem:[#allocation2 + $0x3a] sm:$0xff]
        %v870 = vld [vmem:[#allocation2 + $0x4a] sm:$0xff]
        %v871 = vld [vmem:[#allocation2 + $0x52] sm:$0xff]
        %v872 = vld [vmem:[#allocation2 + $0x62] sm:$0xff]
        %v873 = vld [vmem:[#allocation2 + $0x6a] sm:$0xff]
        %v874 = vld [vmem:[#allocation2 + $0x7a] sm:$0xff]
        %v875 = vld [vmem:[#allocation2 + $0x82] sm:$0xff]
        %v876 = vld [vmem:[#allocation2 + $0x92] sm:$0xff]
        %v877 = vld [vmem:[#allocation2 + $0x9a] sm:$0xff]
        %v878 = vld [vmem:[#allocation2 + $0xaa] sm:$0xff]
        %v879 = vld [vmem:[#allocation2 + $0xb2] sm:$0xff]
        %v880 = vld [vmem:[#allocation2 + $0xc2] sm:$0xff]
        %v881 = vld [vmem:[#allocation2 + $0xca] sm:$0xff]
        %v882 = vld [vmem:[#allocation2 + $0xda] sm:$0xff]
        %v883 = vld [vmem:[#allocation2 + $0xe2] sm:$0xff]
        %v884 = vld [vmem:[#allocation2 + $0xf2] sm:$0xff]
        %v885 = vld [vmem:[#allocation2 + $0xfa] sm:$0xff]
        %v886 = vld [vmem:[#allocation2 + $0x10a] sm:$0xff]
        %v887 = vld [vmem:[#allocation2 + $0x112] sm:$0xff]
        %v888 = vld [vmem:[#allocation2 + $0x122] sm:$0xff]
        %v889 = vld [vmem:[#allocation2 + $0x12a] sm:$0xff]
        %v890 = vld [vmem:[#allocation2 + $0x13a] sm:$0xff]
        %v891 = vld [vmem:[#allocation2 + $0x142] sm:$0xff]
        %v892 = vld [vmem:[#allocation2 + $0x152] sm:$0xff]
        %v893 = vld [vmem:[#allocation2 + $0x15a] sm:$0xff]
        %v894 = vld [vmem:[#allocation2 + $0x16a] sm:$0xff]
        %v895 = vld [vmem:[#allocation2 + $0x172] sm:$0xff]
        %v896 = vld [vmem:[%s3 + $0x2] sm:$0x1]
        %v897 = vperm.slane %v896, 0
        %v898 = vmul.f32 %v864, %v897
        %v899 = vmul.f32 %v865, %v897
        %v900 = vmul.f32 %v866, %v897
        %v901 = vmul.f32 %v867, %v897
        %v902 = vmul.f32 %v868, %v897
        %v903 = vmul.f32 %v869, %v897
        %v904 = vmul.f32 %v870, %v897
        %v905 = vmul.f32 %v871, %v897
        %v906 = vmul.f32 %v872, %v897
        %v907 = vmul.f32 %v873, %v897
        %v908 = vmul.f32 %v874, %v897
        %v909 = vmul.f32 %v875, %v897
        %v910 = vmul.f32 %v876, %v897
        %v911 = vmul.f32 %v877, %v897
        %v912 = vmul.f32 %v878, %v897
        %v913 = vmul.f32 %v879, %v897
        %v914 = vmul.f32 %v880, %v897
        %v915 = vmul.f32 %v881, %v897
        %v916 = vmul.f32 %v882, %v897
        %v917 = vmul.f32 %v883, %v897
        %v918 = vmul.f32 %v884, %v897
        %v919 = vmul.f32 %v885, %v897
        %v920 = vmul.f32 %v886, %v897
        %v921 = vmul.f32 %v887, %v897
        %v922 = vmul.f32 %v888, %v897
        %v923 = vmul.f32 %v889, %v897
        %v924 = vmul.f32 %v890, %v897
        %v925 = vmul.f32 %v891, %v897
        %v926 = vmul.f32 %v892, %v897
        %v927 = vmul.f32 %v893, %v897
        %v928 = vmul.f32 %v894, %v897
        %v929 = vmul.f32 %v895, %v897
        %v930 = vadd.f32 %v832, %v898
        %v931 = vadd.f32 %v833, %v899
        %v932 = vadd.f32 %v834, %v900
        %v933 = vadd.f32 %v835, %v901
        %v934 = vadd.f32 %v836, %v902
        %v935 = vadd.f32 %v837, %v903
        %v936 = vadd.f32 %v838, %v904
        %v937 = vadd.f32 %v839, %v905
        %v938 = vadd.f32 %v840, %v906
        %v939 = vadd.f32 %v841, %v907
        %v940 = vadd.f32 %v842, %v908
        %v941 = vadd.f32 %v843, %v909
        %v942 = vadd.f32 %v844, %v910
        %v943 = vadd.f32 %v845, %v911
        %v944 = vadd.f32 %v846, %v912
        %v945 = vadd.f32 %v847, %v913
        %v946 = vadd.f32 %v848, %v914
        %v947 = vadd.f32 %v849, %v915
        %v948 = vadd.f32 %v850, %v916
        %v949 = vadd.f32 %v851, %v917
        %v950 = vadd.f32 %v852, %v918
        %v951 = vadd.f32 %v853, %v919
        %v952 = vadd.f32 %v854, %v920
        %v953 = vadd.f32 %v855, %v921
        %v954 = vadd.f32 %v856, %v922
        %v955 = vadd.f32 %v857, %v923
        %v956 = vadd.f32 %v858, %v924
        %v957 = vadd.f32 %v859, %v925
        %v958 = vadd.f32 %v860, %v926
        %v959 = vadd.f32 %v861, %v927
        %v960 = vadd.f32 %v862, %v928
        %v961 = vadd.f32 %v863, %v929
        %v962 = vld [vmem:[%s635] sm:$0xff]
        %v963 = vld [vmem:[%s635 + $0x8] sm:$0xff]
        %v964 = vld [vmem:[%s635 + $0x18] sm:$0xff]
        %v965 = vld [vmem:[%s635 + $0x20] sm:$0xff]
        %v966 = vld [vmem:[%s635 + $0x30] sm:$0xff]
        %v967 = vld [vmem:[%s635 + $0x38] sm:$0xff]
        %v968 = vld [vmem:[%s635 + $0x48] sm:$0xff]
        %v969 = vld [vmem:[%s635 + $0x50] sm:$0xff]
        %v970 = vld [vmem:[%s635 + $0x60] sm:$0xff]
        %v971 = vld [vmem:[%s635 + $0x68] sm:$0xff]
        %v972 = vld [vmem:[%s635 + $0x78] sm:$0xff]
        %v973 = vld [vmem:[%s635 + $0x80] sm:$0xff]
        %v974 = vld [vmem:[%s635 + $0x90] sm:$0xff]
        %v975 = vld [vmem:[%s635 + $0x98] sm:$0xff]
        %v976 = vld [vmem:[%s635 + $0xa8] sm:$0xff]
        %v977 = vld [vmem:[%s635 + $0xb0] sm:$0xff]
        %v978 = vld [vmem:[%s635 + $0xc0] sm:$0xff]
        %v979 = vld [vmem:[%s635 + $0xc8] sm:$0xff]
        %v980 = vld [vmem:[%s635 + $0xd8] sm:$0xff]
        %v981 = vld [vmem:[%s635 + $0xe0] sm:$0xff]
        %v982 = vld [vmem:[%s635 + $0xf0] sm:$0xff]
        %v983 = vld [vmem:[%s635 + $0xf8] sm:$0xff]
        %v984 = vld [vmem:[%s635 + $0x108] sm:$0xff]
        %v985 = vld [vmem:[%s635 + $0x110] sm:$0xff]
        %v986 = vld [vmem:[%s635 + $0x120] sm:$0xff]
        %v987 = vld [vmem:[%s635 + $0x128] sm:$0xff]
        %v988 = vld [vmem:[%s635 + $0x138] sm:$0xff]
        %v989 = vld [vmem:[%s635 + $0x140] sm:$0xff]
        %v990 = vld [vmem:[%s635 + $0x150] sm:$0xff]
        %v991 = vld [vmem:[%s635 + $0x158] sm:$0xff]
        %v992 = vld [vmem:[%s635 + $0x168] sm:$0xff]
        %v993 = vld [vmem:[%s635 + $0x170] sm:$0xff]
        %v994 = vld [vmem:[%s3 + $0x3] sm:$0x1]
        %v995 = vperm.slane %v994, 0
        %v996 = vmul.f32 %v962, %v995
        %v997 = vmul.f32 %v963, %v995
        %v998 = vmul.f32 %v964, %v995
        %v999 = vmul.f32 %v965, %v995
        %v1000 = vmul.f32 %v966, %v995
        %v1001 = vmul.f32 %v967, %v995
        %v1002 = vmul.f32 %v968, %v995
        %v1003 = vmul.f32 %v969, %v995
        %v1004 = vmul.f32 %v970, %v995
        %v1005 = vmul.f32 %v971, %v995
        %v1006 = vmul.f32 %v972, %v995
        %v1007 = vmul.f32 %v973, %v995
        %v1008 = vmul.f32 %v974, %v995
        %v1009 = vmul.f32 %v975, %v995
        %v1010 = vmul.f32 %v976, %v995
        %v1011 = vmul.f32 %v977, %v995
        %v1012 = vmul.f32 %v978, %v995
        %v1013 = vmul.f32 %v979, %v995
        %v1014 = vmul.f32 %v980, %v995
        %v1015 = vmul.f32 %v981, %v995
        %v1016 = vmul.f32 %v982, %v995
        %v1017 = vmul.f32 %v983, %v995
        %v1018 = vmul.f32 %v984, %v995
        %v1019 = vmul.f32 %v985, %v995
        %v1020 = vmul.f32 %v986, %v995
        %v1021 = vmul.f32 %v987, %v995
        %v1022 = vmul.f32 %v988, %v995
        %v1023 = vmul.f32 %v989, %v995
        %v1024 = vmul.f32 %v990, %v995
        %v1025 = vmul.f32 %v991, %v995
        %v1026 = vmul.f32 %v992, %v995
        %v1027 = vmul.f32 %v993, %v995
        %v1028 = vadd.f32 %v930, %v996
        %v1029 = vadd.f32 %v931, %v997
        %v1030 = vadd.f32 %v932, %v998
        %v1031 = vadd.f32 %v933, %v999
        %v1032 = vadd.f32 %v934, %v1000
        %v1033 = vadd.f32 %v935, %v1001
        %v1034 = vadd.f32 %v936, %v1002
        %v1035 = vadd.f32 %v937, %v1003
        %v1036 = vadd.f32 %v938, %v1004
        %v1037 = vadd.f32 %v939, %v1005
        %v1038 = vadd.f32 %v940, %v1006
        %v1039 = vadd.f32 %v941, %v1007
        %v1040 = vadd.f32 %v942, %v1008
        %v1041 = vadd.f32 %v943, %v1009
        %v1042 = vadd.f32 %v944, %v1010
        %v1043 = vadd.f32 %v945, %v1011
        %v1044 = vadd.f32 %v946, %v1012
        %v1045 = vadd.f32 %v947, %v1013
        %v1046 = vadd.f32 %v948, %v1014
        %v1047 = vadd.f32 %v949, %v1015
        %v1048 = vadd.f32 %v950, %v1016
        %v1049 = vadd.f32 %v951, %v1017
        %v1050 = vadd.f32 %v952, %v1018
        %v1051 = vadd.f32 %v953, %v1019
        %v1052 = vadd.f32 %v954, %v1020
        %v1053 = vadd.f32 %v955, %v1021
        %v1054 = vadd.f32 %v956, %v1022
        %v1055 = vadd.f32 %v957, %v1023
        %v1056 = vadd.f32 %v958, %v1024
        %v1057 = vadd.f32 %v959, %v1025
        %v1058 = vadd.f32 %v960, %v1026
        %v1059 = vadd.f32 %v961, %v1027
        %v1060 = vld [vmem:[%s635 + $0x1] sm:$0xff]
        %v1061 = vld [vmem:[%s635 + $0x9] sm:$0xff]
        %v1062 = vld [vmem:[%s635 + $0x19] sm:$0xff]
        %v1063 = vld [vmem:[%s635 + $0x21] sm:$0xff]
        %v1064 = vld [vmem:[%s635 + $0x31] sm:$0xff]
        %v1065 = vld [vmem:[%s635 + $0x39] sm:$0xff]
        %v1066 = vld [vmem:[%s635 + $0x49] sm:$0xff]
        %v1067 = vld [vmem:[%s635 + $0x51] sm:$0xff]
        %v1068 = vld [vmem:[%s635 + $0x61] sm:$0xff]
        %v1069 = vld [vmem:[%s635 + $0x69] sm:$0xff]
        %v1070 = vld [vmem:[%s635 + $0x79] sm:$0xff]
        %v1071 = vld [vmem:[%s635 + $0x81] sm:$0xff]
        %v1072 = vld [vmem:[%s635 + $0x91] sm:$0xff]
        %v1073 = vld [vmem:[%s635 + $0x99] sm:$0xff]
        %v1074 = vld [vmem:[%s635 + $0xa9] sm:$0xff]
        %v1075 = vld [vmem:[%s635 + $0xb1] sm:$0xff]
        %v1076 = vld [vmem:[%s635 + $0xc1] sm:$0xff]
        %v1077 = vld [vmem:[%s635 + $0xc9] sm:$0xff]
        %v1078 = vld [vmem:[%s635 + $0xd9] sm:$0xff]
        %v1079 = vld [vmem:[%s635 + $0xe1] sm:$0xff]
        %v1080 = vld [vmem:[%s635 + $0xf1] sm:$0xff]
        %v1081 = vld [vmem:[%s635 + $0xf9] sm:$0xff]
        %v1082 = vld [vmem:[%s635 + $0x109] sm:$0xff]
        %v1083 = vld [vmem:[%s635 + $0x111] sm:$0xff]
        %v1084 = vld [vmem:[%s635 + $0x121] sm:$0xff]
        %v1085 = vld [vmem:[%s635 + $0x129] sm:$0xff]
        %v1086 = vld [vmem:[%s635 + $0x139] sm:$0xff]
        %v1087 = vld [vmem:[%s635 + $0x141] sm:$0xff]
        %v1088 = vld [vmem:[%s635 + $0x151] sm:$0xff]
        %v1089 = vld [vmem:[%s635 + $0x159] sm:$0xff]
        %v1090 = vld [vmem:[%s635 + $0x169] sm:$0xff]
        %v1091 = vld [vmem:[%s635 + $0x171] sm:$0xff]
        %v1092 = vld [vmem:[%s3 + $0x4] sm:$0x1]
        %v1093 = vperm.slane %v1092, 0
        %v1094 = vmul.f32 %v1060, %v1093
        %v1095 = vmul.f32 %v1061, %v1093
        %v1096 = vmul.f32 %v1062, %v1093
        %v1097 = vmul.f32 %v1063, %v1093
        %v1098 = vmul.f32 %v1064, %v1093
        %v1099 = vmul.f32 %v1065, %v1093
        %v1100 = vmul.f32 %v1066, %v1093
        %v1101 = vmul.f32 %v1067, %v1093
        %v1102 = vmul.f32 %v1068, %v1093
        %v1103 = vmul.f32 %v1069, %v1093
        %v1104 = vmul.f32 %v1070, %v1093
        %v1105 = vmul.f32 %v1071, %v1093
        %v1106 = vmul.f32 %v1072, %v1093
        %v1107 = vmul.f32 %v1073, %v1093
        %v1108 = vmul.f32 %v1074, %v1093
        %v1109 = vmul.f32 %v1075, %v1093
        %v1110 = vmul.f32 %v1076, %v1093
        %v1111 = vmul.f32 %v1077, %v1093
        %v1112 = vmul.f32 %v1078, %v1093
        %v1113 = vmul.f32 %v1079, %v1093
        %v1114 = vmul.f32 %v1080, %v1093
        %v1115 = vmul.f32 %v1081, %v1093
        %v1116 = vmul.f32 %v1082, %v1093
        %v1117 = vmul.f32 %v1083, %v1093
        %v1118 = vmul.f32 %v1084, %v1093
        %v1119 = vmul.f32 %v1085, %v1093
        %v1120 = vmul.f32 %v1086, %v1093
        %v1121 = vmul.f32 %v1087, %v1093
        %v1122 = vmul.f32 %v1088, %v1093
        %v1123 = vmul.f32 %v1089, %v1093
        %v1124 = vmul.f32 %v1090, %v1093
        %v1125 = vmul.f32 %v1091, %v1093
        %v1126 = vadd.f32 %v1028, %v1094
        %v1127 = vadd.f32 %v1029, %v1095
        %v1128 = vadd.f32 %v1030, %v1096
        %v1129 = vadd.f32 %v1031, %v1097
        %v1130 = vadd.f32 %v1032, %v1098
        %v1131 = vadd.f32 %v1033, %v1099
        %v1132 = vadd.f32 %v1034, %v1100
        %v1133 = vadd.f32 %v1035, %v1101
        %v1134 = vadd.f32 %v1036, %v1102
        %v1135 = vadd.f32 %v1037, %v1103
        %v1136 = vadd.f32 %v1038, %v1104
        %v1137 = vadd.f32 %v1039, %v1105
        %v1138 = vadd.f32 %v1040, %v1106
        %v1139 = vadd.f32 %v1041, %v1107
        %v1140 = vadd.f32 %v1042, %v1108
        %v1141 = vadd.f32 %v1043, %v1109
        %v1142 = vadd.f32 %v1044, %v1110
        %v1143 = vadd.f32 %v1045, %v1111
        %v1144 = vadd.f32 %v1046, %v1112
        %v1145 = vadd.f32 %v1047, %v1113
        %v1146 = vadd.f32 %v1048, %v1114
        %v1147 = vadd.f32 %v1049, %v1115
        %v1148 = vadd.f32 %v1050, %v1116
        %v1149 = vadd.f32 %v1051, %v1117
        %v1150 = vadd.f32 %v1052, %v1118
        %v1151 = vadd.f32 %v1053, %v1119
        %v1152 = vadd.f32 %v1054, %v1120
        %v1153 = vadd.f32 %v1055, %v1121
        %v1154 = vadd.f32 %v1056, %v1122
        %v1155 = vadd.f32 %v1057, %v1123
        %v1156 = vadd.f32 %v1058, %v1124
        %v1157 = vadd.f32 %v1059, %v1125
        %v1158 = vld [vmem:[%s635 + $0x2] sm:$0xff]
        %v1159 = vld [vmem:[%s635 + $0xa] sm:$0xff]
        %v1160 = vld [vmem:[%s635 + $0x1a] sm:$0xff]
        %v1161 = vld [vmem:[%s635 + $0x22] sm:$0xff]
        %v1162 = vld [vmem:[%s635 + $0x32] sm:$0xff]
        %v1163 = vld [vmem:[%s635 + $0x3a] sm:$0xff]
        %v1164 = vld [vmem:[%s635 + $0x4a] sm:$0xff]
        %v1165 = vld [vmem:[%s635 + $0x52] sm:$0xff]
        %v1166 = vld [vmem:[%s635 + $0x62] sm:$0xff]
        %v1167 = vld [vmem:[%s635 + $0x6a] sm:$0xff]
        %v1168 = vld [vmem:[%s635 + $0x7a] sm:$0xff]
        %v1169 = vld [vmem:[%s635 + $0x82] sm:$0xff]
        %v1170 = vld [vmem:[%s635 + $0x92] sm:$0xff]
        %v1171 = vld [vmem:[%s635 + $0x9a] sm:$0xff]
        %v1172 = vld [vmem:[%s635 + $0xaa] sm:$0xff]
        %v1173 = vld [vmem:[%s635 + $0xb2] sm:$0xff]
        %v1174 = vld [vmem:[%s635 + $0xc2] sm:$0xff]
        %v1175 = vld [vmem:[%s635 + $0xca] sm:$0xff]
        %v1176 = vld [vmem:[%s635 + $0xda] sm:$0xff]
        %v1177 = vld [vmem:[%s635 + $0xe2] sm:$0xff]
        %v1178 = vld [vmem:[%s635 + $0xf2] sm:$0xff]
        %v1179 = vld [vmem:[%s635 + $0xfa] sm:$0xff]
        %v1180 = vld [vmem:[%s635 + $0x10a] sm:$0xff]
        %v1181 = vld [vmem:[%s635 + $0x112] sm:$0xff]
        %v1182 = vld [vmem:[%s635 + $0x122] sm:$0xff]
        %v1183 = vld [vmem:[%s635 + $0x12a] sm:$0xff]
        %v1184 = vld [vmem:[%s635 + $0x13a] sm:$0xff]
        %v1185 = vld [vmem:[%s635 + $0x142] sm:$0xff]
        %v1186 = vld [vmem:[%s635 + $0x152] sm:$0xff]
        %v1187 = vld [vmem:[%s635 + $0x15a] sm:$0xff]
        %v1188 = vld [vmem:[%s635 + $0x16a] sm:$0xff]
        %v1189 = vld [vmem:[%s635 + $0x172] sm:$0xff]
        %v1190 = vld [vmem:[%s3 + $0x5] sm:$0x1]
        %v1191 = vperm.slane %v1190, 0
        %v1192 = vmul.f32 %v1158, %v1191
        %v1193 = vmul.f32 %v1159, %v1191
        %v1194 = vmul.f32 %v1160, %v1191
        %v1195 = vmul.f32 %v1161, %v1191
        %v1196 = vmul.f32 %v1162, %v1191
        %v1197 = vmul.f32 %v1163, %v1191
        %v1198 = vmul.f32 %v1164, %v1191
        %v1199 = vmul.f32 %v1165, %v1191
        %v1200 = vmul.f32 %v1166, %v1191
        %v1201 = vmul.f32 %v1167, %v1191
        %v1202 = vmul.f32 %v1168, %v1191
        %v1203 = vmul.f32 %v1169, %v1191
        %v1204 = vmul.f32 %v1170, %v1191
        %v1205 = vmul.f32 %v1171, %v1191
        %v1206 = vmul.f32 %v1172, %v1191
        %v1207 = vmul.f32 %v1173, %v1191
        %v1208 = vmul.f32 %v1174, %v1191
        %v1209 = vmul.f32 %v1175, %v1191
        %v1210 = vmul.f32 %v1176, %v1191
        %v1211 = vmul.f32 %v1177, %v1191
        %v1212 = vmul.f32 %v1178, %v1191
        %v1213 = vmul.f32 %v1179, %v1191
        %v1214 = vmul.f32 %v1180, %v1191
        %v1215 = vmul.f32 %v1181, %v1191
        %v1216 = vmul.f32 %v1182, %v1191
        %v1217 = vmul.f32 %v1183, %v1191
        %v1218 = vmul.f32 %v1184, %v1191
        %v1219 = vmul.f32 %v1185, %v1191
        %v1220 = vmul.f32 %v1186, %v1191
        %v1221 = vmul.f32 %v1187, %v1191
        %v1222 = vmul.f32 %v1188, %v1191
        %v1223 = vmul.f32 %v1189, %v1191
        %v1224 = vadd.f32 %v1126, %v1192
        %v1225 = vadd.f32 %v1127, %v1193
        %v1226 = vadd.f32 %v1128, %v1194
        %v1227 = vadd.f32 %v1129, %v1195
        %v1228 = vadd.f32 %v1130, %v1196
        %v1229 = vadd.f32 %v1131, %v1197
        %v1230 = vadd.f32 %v1132, %v1198
        %v1231 = vadd.f32 %v1133, %v1199
        %v1232 = vadd.f32 %v1134, %v1200
        %v1233 = vadd.f32 %v1135, %v1201
        %v1234 = vadd.f32 %v1136, %v1202
        %v1235 = vadd.f32 %v1137, %v1203
        %v1236 = vadd.f32 %v1138, %v1204
        %v1237 = vadd.f32 %v1139, %v1205
        %v1238 = vadd.f32 %v1140, %v1206
        %v1239 = vadd.f32 %v1141, %v1207
        %v1240 = vadd.f32 %v1142, %v1208
        %v1241 = vadd.f32 %v1143, %v1209
        %v1242 = vadd.f32 %v1144, %v1210
        %v1243 = vadd.f32 %v1145, %v1211
        %v1244 = vadd.f32 %v1146, %v1212
        %v1245 = vadd.f32 %v1147, %v1213
        %v1246 = vadd.f32 %v1148, %v1214
        %v1247 = vadd.f32 %v1149, %v1215
        %v1248 = vadd.f32 %v1150, %v1216
        %v1249 = vadd.f32 %v1151, %v1217
        %v1250 = vadd.f32 %v1152, %v1218
        %v1251 = vadd.f32 %v1153, %v1219
        %v1252 = vadd.f32 %v1154, %v1220
        %v1253 = vadd.f32 %v1155, %v1221
        %v1254 = vadd.f32 %v1156, %v1222
        %v1255 = vadd.f32 %v1157, %v1223
        %s1256 = scalar_lea.vmem [#allocation2], 48
        %v1257 = vld [vmem:[%s1256] sm:$0xff]
        %v1258 = vld [vmem:[%s1256 + $0x8] sm:$0xff]
        %v1259 = vld [vmem:[%s1256 + $0x18] sm:$0xff]
        %v1260 = vld [vmem:[%s1256 + $0x20] sm:$0xff]
        %v1261 = vld [vmem:[%s1256 + $0x30] sm:$0xff]
        %v1262 = vld [vmem:[%s1256 + $0x38] sm:$0xff]
        %v1263 = vld [vmem:[%s1256 + $0x48] sm:$0xff]
        %v1264 = vld [vmem:[%s1256 + $0x50] sm:$0xff]
        %v1265 = vld [vmem:[%s1256 + $0x60] sm:$0xff]
        %v1266 = vld [vmem:[%s1256 + $0x68] sm:$0xff]
        %v1267 = vld [vmem:[%s1256 + $0x78] sm:$0xff]
        %v1268 = vld [vmem:[%s1256 + $0x80] sm:$0xff]
        %v1269 = vld [vmem:[%s1256 + $0x90] sm:$0xff]
        %v1270 = vld [vmem:[%s1256 + $0x98] sm:$0xff]
        %v1271 = vld [vmem:[%s1256 + $0xa8] sm:$0xff]
        %v1272 = vld [vmem:[%s1256 + $0xb0] sm:$0xff]
        %v1273 = vld [vmem:[%s1256 + $0xc0] sm:$0xff]
        %v1274 = vld [vmem:[%s1256 + $0xc8] sm:$0xff]
        %v1275 = vld [vmem:[%s1256 + $0xd8] sm:$0xff]
        %v1276 = vld [vmem:[%s1256 + $0xe0] sm:$0xff]
        %v1277 = vld [vmem:[%s1256 + $0xf0] sm:$0xff]
        %v1278 = vld [vmem:[%s1256 + $0xf8] sm:$0xff]
        %v1279 = vld [vmem:[%s1256 + $0x108] sm:$0xff]
        %v1280 = vld [vmem:[%s1256 + $0x110] sm:$0xff]
        %v1281 = vld [vmem:[%s1256 + $0x120] sm:$0xff]
        %v1282 = vld [vmem:[%s1256 + $0x128] sm:$0xff]
        %v1283 = vld [vmem:[%s1256 + $0x138] sm:$0xff]
        %v1284 = vld [vmem:[%s1256 + $0x140] sm:$0xff]
        %v1285 = vld [vmem:[%s1256 + $0x150] sm:$0xff]
        %v1286 = vld [vmem:[%s1256 + $0x158] sm:$0xff]
        %v1287 = vld [vmem:[%s1256 + $0x168] sm:$0xff]
        %v1288 = vld [vmem:[%s1256 + $0x170] sm:$0xff]
        %v1289 = vld [vmem:[%s3 + $0x6] sm:$0x1]
        %v1290 = vperm.slane %v1289, 0
        %v1291 = vmul.f32 %v1257, %v1290
        %v1292 = vmul.f32 %v1258, %v1290
        %v1293 = vmul.f32 %v1259, %v1290
        %v1294 = vmul.f32 %v1260, %v1290
        %v1295 = vmul.f32 %v1261, %v1290
        %v1296 = vmul.f32 %v1262, %v1290
        %v1297 = vmul.f32 %v1263, %v1290
        %v1298 = vmul.f32 %v1264, %v1290
        %v1299 = vmul.f32 %v1265, %v1290
        %v1300 = vmul.f32 %v1266, %v1290
        %v1301 = vmul.f32 %v1267, %v1290
        %v1302 = vmul.f32 %v1268, %v1290
        %v1303 = vmul.f32 %v1269, %v1290
        %v1304 = vmul.f32 %v1270, %v1290
        %v1305 = vmul.f32 %v1271, %v1290
        %v1306 = vmul.f32 %v1272, %v1290
        %v1307 = vmul.f32 %v1273, %v1290
        %v1308 = vmul.f32 %v1274, %v1290
        %v1309 = vmul.f32 %v1275, %v1290
        %v1310 = vmul.f32 %v1276, %v1290
        %v1311 = vmul.f32 %v1277, %v1290
        %v1312 = vmul.f32 %v1278, %v1290
        %v1313 = vmul.f32 %v1279, %v1290
        %v1314 = vmul.f32 %v1280, %v1290
        %v1315 = vmul.f32 %v1281, %v1290
        %v1316 = vmul.f32 %v1282, %v1290
        %v1317 = vmul.f32 %v1283, %v1290
        %v1318 = vmul.f32 %v1284, %v1290
        %v1319 = vmul.f32 %v1285, %v1290
        %v1320 = vmul.f32 %v1286, %v1290
        %v1321 = vmul.f32 %v1287, %v1290
        %v1322 = vmul.f32 %v1288, %v1290
        %v1323 = vadd.f32 %v1224, %v1291
        %v1324 = vadd.f32 %v1225, %v1292
        %v1325 = vadd.f32 %v1226, %v1293
        %v1326 = vadd.f32 %v1227, %v1294
        %v1327 = vadd.f32 %v1228, %v1295
        %v1328 = vadd.f32 %v1229, %v1296
        %v1329 = vadd.f32 %v1230, %v1297
        %v1330 = vadd.f32 %v1231, %v1298
        %v1331 = vadd.f32 %v1232, %v1299
        %v1332 = vadd.f32 %v1233, %v1300
        %v1333 = vadd.f32 %v1234, %v1301
        %v1334 = vadd.f32 %v1235, %v1302
        %v1335 = vadd.f32 %v1236, %v1303
        %v1336 = vadd.f32 %v1237, %v1304
        %v1337 = vadd.f32 %v1238, %v1305
        %v1338 = vadd.f32 %v1239, %v1306
        %v1339 = vadd.f32 %v1240, %v1307
        %v1340 = vadd.f32 %v1241, %v1308
        %v1341 = vadd.f32 %v1242, %v1309
        %v1342 = vadd.f32 %v1243, %v1310
        %v1343 = vadd.f32 %v1244, %v1311
        %v1344 = vadd.f32 %v1245, %v1312
        %v1345 = vadd.f32 %v1246, %v1313
        %v1346 = vadd.f32 %v1247, %v1314
        %v1347 = vadd.f32 %v1248, %v1315
        %v1348 = vadd.f32 %v1249, %v1316
        %v1349 = vadd.f32 %v1250, %v1317
        %v1350 = vadd.f32 %v1251, %v1318
        %v1351 = vadd.f32 %v1252, %v1319
        %v1352 = vadd.f32 %v1253, %v1320
        %v1353 = vadd.f32 %v1254, %v1321
        %v1354 = vadd.f32 %v1255, %v1322
        %v1355 = vld [vmem:[%s1256 + $0x1] sm:$0xff]
        %v1356 = vld [vmem:[%s1256 + $0x9] sm:$0xff]
        %v1357 = vld [vmem:[%s1256 + $0x19] sm:$0xff]
        %v1358 = vld [vmem:[%s1256 + $0x21] sm:$0xff]
        %v1359 = vld [vmem:[%s1256 + $0x31] sm:$0xff]
        %v1360 = vld [vmem:[%s1256 + $0x39] sm:$0xff]
        %v1361 = vld [vmem:[%s1256 + $0x49] sm:$0xff]
        %v1362 = vld [vmem:[%s1256 + $0x51] sm:$0xff]
        %v1363 = vld [vmem:[%s1256 + $0x61] sm:$0xff]
        %v1364 = vld [vmem:[%s1256 + $0x69] sm:$0xff]
        %v1365 = vld [vmem:[%s1256 + $0x79] sm:$0xff]
        %v1366 = vld [vmem:[%s1256 + $0x81] sm:$0xff]
        %v1367 = vld [vmem:[%s1256 + $0x91] sm:$0xff]
        %v1368 = vld [vmem:[%s1256 + $0x99] sm:$0xff]
        %v1369 = vld [vmem:[%s1256 + $0xa9] sm:$0xff]
        %v1370 = vld [vmem:[%s1256 + $0xb1] sm:$0xff]
        %v1371 = vld [vmem:[%s1256 + $0xc1] sm:$0xff]
        %v1372 = vld [vmem:[%s1256 + $0xc9] sm:$0xff]
        %v1373 = vld [vmem:[%s1256 + $0xd9] sm:$0xff]
        %v1374 = vld [vmem:[%s1256 + $0xe1] sm:$0xff]
        %v1375 = vld [vmem:[%s1256 + $0xf1] sm:$0xff]
        %v1376 = vld [vmem:[%s1256 + $0xf9] sm:$0xff]
        %v1377 = vld [vmem:[%s1256 + $0x109] sm:$0xff]
        %v1378 = vld [vmem:[%s1256 + $0x111] sm:$0xff]
        %v1379 = vld [vmem:[%s1256 + $0x121] sm:$0xff]
        %v1380 = vld [vmem:[%s1256 + $0x129] sm:$0xff]
        %v1381 = vld [vmem:[%s1256 + $0x139] sm:$0xff]
        %v1382 = vld [vmem:[%s1256 + $0x141] sm:$0xff]
        %v1383 = vld [vmem:[%s1256 + $0x151] sm:$0xff]
        %v1384 = vld [vmem:[%s1256 + $0x159] sm:$0xff]
        %v1385 = vld [vmem:[%s1256 + $0x169] sm:$0xff]
        %v1386 = vld [vmem:[%s1256 + $0x171] sm:$0xff]
        %v1387 = vld [vmem:[%s3 + $0x7] sm:$0x1]
        %v1388 = vperm.slane %v1387, 0
        %v1389 = vmul.f32 %v1355, %v1388
        %v1390 = vmul.f32 %v1356, %v1388
        %v1391 = vmul.f32 %v1357, %v1388
        %v1392 = vmul.f32 %v1358, %v1388
        %v1393 = vmul.f32 %v1359, %v1388
        %v1394 = vmul.f32 %v1360, %v1388
        %v1395 = vmul.f32 %v1361, %v1388
        %v1396 = vmul.f32 %v1362, %v1388
        %v1397 = vmul.f32 %v1363, %v1388
        %v1398 = vmul.f32 %v1364, %v1388
        %v1399 = vmul.f32 %v1365, %v1388
        %v1400 = vmul.f32 %v1366, %v1388
        %v1401 = vmul.f32 %v1367, %v1388
        %v1402 = vmul.f32 %v1368, %v1388
        %v1403 = vmul.f32 %v1369, %v1388
        %v1404 = vmul.f32 %v1370, %v1388
        %v1405 = vmul.f32 %v1371, %v1388
        %v1406 = vmul.f32 %v1372, %v1388
        %v1407 = vmul.f32 %v1373, %v1388
        %v1408 = vmul.f32 %v1374, %v1388
        %v1409 = vmul.f32 %v1375, %v1388
        %v1410 = vmul.f32 %v1376, %v1388
        %v1411 = vmul.f32 %v1377, %v1388
        %v1412 = vmul.f32 %v1378, %v1388
        %v1413 = vmul.f32 %v1379, %v1388
        %v1414 = vmul.f32 %v1380, %v1388
        %v1415 = vmul.f32 %v1381, %v1388
        %v1416 = vmul.f32 %v1382, %v1388
        %v1417 = vmul.f32 %v1383, %v1388
        %v1418 = vmul.f32 %v1384, %v1388
        %v1419 = vmul.f32 %v1385, %v1388
        %v1420 = vmul.f32 %v1386, %v1388
        %v1421 = vadd.f32 %v1323, %v1389
        %v1422 = vadd.f32 %v1324, %v1390
        %v1423 = vadd.f32 %v1325, %v1391
        %v1424 = vadd.f32 %v1326, %v1392
        %v1425 = vadd.f32 %v1327, %v1393
        %v1426 = vadd.f32 %v1328, %v1394
        %v1427 = vadd.f32 %v1329, %v1395
        %v1428 = vadd.f32 %v1330, %v1396
        %v1429 = vadd.f32 %v1331, %v1397
        %v1430 = vadd.f32 %v1332, %v1398
        %v1431 = vadd.f32 %v1333, %v1399
        %v1432 = vadd.f32 %v1334, %v1400
        %v1433 = vadd.f32 %v1335, %v1401
        %v1434 = vadd.f32 %v1336, %v1402
        %v1435 = vadd.f32 %v1337, %v1403
        %v1436 = vadd.f32 %v1338, %v1404
        %v1437 = vadd.f32 %v1339, %v1405
        %v1438 = vadd.f32 %v1340, %v1406
        %v1439 = vadd.f32 %v1341, %v1407
        %v1440 = vadd.f32 %v1342, %v1408
        %v1441 = vadd.f32 %v1343, %v1409
        %v1442 = vadd.f32 %v1344, %v1410
        %v1443 = vadd.f32 %v1345, %v1411
        %v1444 = vadd.f32 %v1346, %v1412
        %v1445 = vadd.f32 %v1347, %v1413
        %v1446 = vadd.f32 %v1348, %v1414
        %v1447 = vadd.f32 %v1349, %v1415
        %v1448 = vadd.f32 %v1350, %v1416
        %v1449 = vadd.f32 %v1351, %v1417
        %v1450 = vadd.f32 %v1352, %v1418
        %v1451 = vadd.f32 %v1353, %v1419
        %v1452 = vadd.f32 %v1354, %v1420
        %v1453 = vld [vmem:[%s1256 + $0x2] sm:$0xff]
        %v1454 = vld [vmem:[%s1256 + $0xa] sm:$0xff]
        %v1455 = vld [vmem:[%s1256 + $0x1a] sm:$0xff]
        %v1456 = vld [vmem:[%s1256 + $0x22] sm:$0xff]
        %v1457 = vld [vmem:[%s1256 + $0x32] sm:$0xff]
        %v1458 = vld [vmem:[%s1256 + $0x3a] sm:$0xff]
        %v1459 = vld [vmem:[%s1256 + $0x4a] sm:$0xff]
        %v1460 = vld [vmem:[%s1256 + $0x52] sm:$0xff]
        %v1461 = vld [vmem:[%s1256 + $0x62] sm:$0xff]
        %v1462 = vld [vmem:[%s1256 + $0x6a] sm:$0xff]
        %v1463 = vld [vmem:[%s1256 + $0x7a] sm:$0xff]
        %v1464 = vld [vmem:[%s1256 + $0x82] sm:$0xff]
        %v1465 = vld [vmem:[%s1256 + $0x92] sm:$0xff]
        %v1466 = vld [vmem:[%s1256 + $0x9a] sm:$0xff]
        %v1467 = vld [vmem:[%s1256 + $0xaa] sm:$0xff]
        %v1468 = vld [vmem:[%s1256 + $0xb2] sm:$0xff]
        %v1469 = vld [vmem:[%s1256 + $0xc2] sm:$0xff]
        %v1470 = vld [vmem:[%s1256 + $0xca] sm:$0xff]
        %v1471 = vld [vmem:[%s1256 + $0xda] sm:$0xff]
        %v1472 = vld [vmem:[%s1256 + $0xe2] sm:$0xff]
        %v1473 = vld [vmem:[%s1256 + $0xf2] sm:$0xff]
        %v1474 = vld [vmem:[%s1256 + $0xfa] sm:$0xff]
        %v1475 = vld [vmem:[%s1256 + $0x10a] sm:$0xff]
        %v1476 = vld [vmem:[%s1256 + $0x112] sm:$0xff]
        %v1477 = vld [vmem:[%s1256 + $0x122] sm:$0xff]
        %v1478 = vld [vmem:[%s1256 + $0x12a] sm:$0xff]
        %v1479 = vld [vmem:[%s1256 + $0x13a] sm:$0xff]
        %v1480 = vld [vmem:[%s1256 + $0x142] sm:$0xff]
        %v1481 = vld [vmem:[%s1256 + $0x152] sm:$0xff]
        %v1482 = vld [vmem:[%s1256 + $0x15a] sm:$0xff]
        %v1483 = vld [vmem:[%s1256 + $0x16a] sm:$0xff]
        %v1484 = vld [vmem:[%s1256 + $0x172] sm:$0xff]
        %v1485 = vld [vmem:[%s3 + $0x8] sm:$0x1]
        %v1486 = vperm.slane %v1485, 0
        %v1487 = vmul.f32 %v1453, %v1486
        %v1488 = vmul.f32 %v1454, %v1486
        %v1489 = vmul.f32 %v1455, %v1486
        %v1490 = vmul.f32 %v1456, %v1486
        %v1491 = vmul.f32 %v1457, %v1486
        %v1492 = vmul.f32 %v1458, %v1486
        %v1493 = vmul.f32 %v1459, %v1486
        %v1494 = vmul.f32 %v1460, %v1486
        %v1495 = vmul.f32 %v1461, %v1486
        %v1496 = vmul.f32 %v1462, %v1486
        %v1497 = vmul.f32 %v1463, %v1486
        %v1498 = vmul.f32 %v1464, %v1486
        %v1499 = vmul.f32 %v1465, %v1486
        %v1500 = vmul.f32 %v1466, %v1486
        %v1501 = vmul.f32 %v1467, %v1486
        %v1502 = vmul.f32 %v1468, %v1486
        %v1503 = vmul.f32 %v1469, %v1486
        %v1504 = vmul.f32 %v1470, %v1486
        %v1505 = vmul.f32 %v1471, %v1486
        %v1506 = vmul.f32 %v1472, %v1486
        %v1507 = vmul.f32 %v1473, %v1486
        %v1508 = vmul.f32 %v1474, %v1486
        %v1509 = vmul.f32 %v1475, %v1486
        %v1510 = vmul.f32 %v1476, %v1486
        %v1511 = vmul.f32 %v1477, %v1486
        %v1512 = vmul.f32 %v1478, %v1486
        %v1513 = vmul.f32 %v1479, %v1486
        %v1514 = vmul.f32 %v1480, %v1486
        %v1515 = vmul.f32 %v1481, %v1486
        %v1516 = vmul.f32 %v1482, %v1486
        %v1517 = vmul.f32 %v1483, %v1486
        %v1518 = vmul.f32 %v1484, %v1486
        %v1519 = vadd.f32 %v1421, %v1487
        %v1520 = vadd.f32 %v1422, %v1488
        %v1521 = vadd.f32 %v1423, %v1489
        %v1522 = vadd.f32 %v1424, %v1490
        %v1523 = vadd.f32 %v1425, %v1491
        %v1524 = vadd.f32 %v1426, %v1492
        %v1525 = vadd.f32 %v1427, %v1493
        %v1526 = vadd.f32 %v1428, %v1494
        %v1527 = vadd.f32 %v1429, %v1495
        %v1528 = vadd.f32 %v1430, %v1496
        %v1529 = vadd.f32 %v1431, %v1497
        %v1530 = vadd.f32 %v1432, %v1498
        %v1531 = vadd.f32 %v1433, %v1499
        %v1532 = vadd.f32 %v1434, %v1500
        %v1533 = vadd.f32 %v1435, %v1501
        %v1534 = vadd.f32 %v1436, %v1502
        %v1535 = vadd.f32 %v1437, %v1503
        %v1536 = vadd.f32 %v1438, %v1504
        %v1537 = vadd.f32 %v1439, %v1505
        %v1538 = vadd.f32 %v1440, %v1506
        %v1539 = vadd.f32 %v1441, %v1507
        %v1540 = vadd.f32 %v1442, %v1508
        %v1541 = vadd.f32 %v1443, %v1509
        %v1542 = vadd.f32 %v1444, %v1510
        %v1543 = vadd.f32 %v1445, %v1511
        %v1544 = vadd.f32 %v1446, %v1512
        %v1545 = vadd.f32 %v1447, %v1513
        %v1546 = vadd.f32 %v1448, %v1514
        %v1547 = vadd.f32 %v1449, %v1515
        %v1548 = vadd.f32 %v1450, %v1516
        %v1549 = vadd.f32 %v1451, %v1517
        %v1550 = vadd.f32 %v1452, %v1518
        %v1551 = vld [vmem:[%s4] sm:$0x1]
        %v1553 = vperm.slane %v1551, 0
        %v1555 = vadd.f32 %v1519, %v1553
        %v1556 = vadd.f32 %v1520, %v1553
        %v1557 = vadd.f32 %v1521, %v1553
        %v1558 = vadd.f32 %v1522, %v1553
        %v1559 = vadd.f32 %v1523, %v1553
        %v1560 = vadd.f32 %v1524, %v1553
        %v1561 = vadd.f32 %v1525, %v1553
        %v1562 = vadd.f32 %v1526, %v1553
        %v1563 = vadd.f32 %v1527, %v1553
        %v1564 = vadd.f32 %v1528, %v1553
        %v1565 = vadd.f32 %v1529, %v1553
        %v1566 = vadd.f32 %v1530, %v1553
        %v1567 = vadd.f32 %v1531, %v1553
        %v1568 = vadd.f32 %v1532, %v1553
        %v1569 = vadd.f32 %v1533, %v1553
        %v1570 = vadd.f32 %v1534, %v1553
        %v1571 = vadd.f32 %v1535, %v1553
        %v1572 = vadd.f32 %v1536, %v1553
        %v1573 = vadd.f32 %v1537, %v1553
        %v1574 = vadd.f32 %v1538, %v1553
        %v1575 = vadd.f32 %v1539, %v1553
        %v1576 = vadd.f32 %v1540, %v1553
        %v1577 = vadd.f32 %v1541, %v1553
        %v1578 = vadd.f32 %v1542, %v1553
        %v1579 = vadd.f32 %v1543, %v1553
        %v1580 = vadd.f32 %v1544, %v1553
        %v1581 = vadd.f32 %v1545, %v1553
        %v1582 = vadd.f32 %v1546, %v1553
        %v1583 = vadd.f32 %v1547, %v1553
        %v1584 = vadd.f32 %v1548, %v1553
        %v1585 = vadd.f32 %v1549, %v1553
        %v1586 = vadd.f32 %v1550, %v1553
        %v1587 = vmax.f32 %v1555, 0.0
        %v1588 = vmax.f32 %v1556, 0.0
        %v1589 = vmax.f32 %v1557, 0.0
        %v1590 = vmax.f32 %v1558, 0.0
        %v1591 = vmax.f32 %v1559, 0.0
        %v1592 = vmax.f32 %v1560, 0.0
        %v1593 = vmax.f32 %v1561, 0.0
        %v1594 = vmax.f32 %v1562, 0.0
        %v1595 = vmax.f32 %v1563, 0.0
        %v1596 = vmax.f32 %v1564, 0.0
        %v1597 = vmax.f32 %v1565, 0.0
        %v1598 = vmax.f32 %v1566, 0.0
        %v1599 = vmax.f32 %v1567, 0.0
        %v1600 = vmax.f32 %v1568, 0.0
        %v1601 = vmax.f32 %v1569, 0.0
        %v1602 = vmax.f32 %v1570, 0.0
        %v1603 = vmax.f32 %v1571, 0.0
        %v1604 = vmax.f32 %v1572, 0.0
        %v1605 = vmax.f32 %v1573, 0.0
        %v1606 = vmax.f32 %v1574, 0.0
        %v1607 = vmax.f32 %v1575, 0.0
        %v1608 = vmax.f32 %v1576, 0.0
        %v1609 = vmax.f32 %v1577, 0.0
        %v1610 = vmax.f32 %v1578, 0.0
        %v1611 = vmax.f32 %v1579, 0.0
        %v1612 = vmax.f32 %v1580, 0.0
        %v1613 = vmax.f32 %v1581, 0.0
        %v1614 = vmax.f32 %v1582, 0.0
        %v1615 = vmax.f32 %v1583, 0.0
        %v1616 = vmax.f32 %v1584, 0.0
        %v1617 = vmax.f32 %v1585, 0.0
        %v1618 = vmax.f32 %v1586, 0.0
        %v1619 = vld [vmem:[%s5] sm:$0xff]
        %v1620 = vld [vmem:[%s5 + $0x8] sm:$0xff]
        %v1621 = vld [vmem:[%s5 + $0x10] sm:$0xff]
        %v1622 = vld [vmem:[%s5 + $0x18] sm:$0xff]
        %v1623 = vld [vmem:[%s5 + $0x20] sm:$0xff]
        %v1624 = vld [vmem:[%s5 + $0x28] sm:$0xff]
        %v1625 = vld [vmem:[%s5 + $0x30] sm:$0xff]
        %v1626 = vld [vmem:[%s5 + $0x38] sm:$0xff]
        %v1627 = vld [vmem:[%s5 + $0x40] sm:$0xff]
        %v1628 = vld [vmem:[%s5 + $0x48] sm:$0xff]
        %v1629 = vld [vmem:[%s5 + $0x50] sm:$0xff]
        %v1630 = vld [vmem:[%s5 + $0x58] sm:$0xff]
        %v1631 = vld [vmem:[%s5 + $0x60] sm:$0xff]
        %v1632 = vld [vmem:[%s5 + $0x68] sm:$0xff]
        %v1633 = vld [vmem:[%s5 + $0x70] sm:$0xff]
        %v1634 = vld [vmem:[%s5 + $0x78] sm:$0xff]
        %v1635 = vld [vmem:[%s6] sm:$0x1]
        %v1637 = vperm.slane %v1635, 0
        %1639 = vmatpush.msra.mxu0 %v1634
        %1640 = vmatpush.msra.mxu0 %v1633
        %1641 = vmatpush.msra.mxu0 %v1632
        %1642 = vmatpush.msra.mxu0 %v1631
        %1643 = vmatpush.msra.mxu0 %v1630
        %1644 = vmatpush.msra.mxu0 %v1629
        %1645 = vmatpush.msra.mxu0 %v1628
        %1646 = vmatpush.msra.mxu0 %v1627
        %1647 = vmatpush.msra.mxu0 %v1626
        %1648 = vmatpush.msra.mxu0 %v1625
        %1649 = vmatpush.msra.mxu0 %v1624
        %1650 = vmatpush.msra.mxu0 %v1623
        %1651 = vmatpush.msra.mxu0 %v1622
        %1652 = vmatpush.msra.mxu0 %v1621
        %1653 = vmatpush.msra.mxu0 %v1620
        %1654 = vmatpush.msra.mxu0 %v1619
        %1655 = vmatmul.f32.gmra.mxu0 %v1587
        %v1656 = vpop.f32.mrf.mxu0
        %v1657 = vadd.f32 %v1637, %v1656
        %1658 = vmatmul.f32.gmra.mxu0 %v1588
        %v1659 = vpop.f32.mrf.mxu0
        %v1660 = vadd.f32 %v1637, %v1659
        %1661 = vmatmul.f32.gmra.mxu0 %v1589
        %v1662 = vpop.f32.mrf.mxu0
        %v1663 = vadd.f32 %v1637, %v1662
        %1664 = vmatmul.f32.gmra.mxu0 %v1590
        %v1665 = vpop.f32.mrf.mxu0
        %v1666 = vadd.f32 %v1637, %v1665
        %1667 = vmatmul.f32.gmra.mxu0 %v1591
        %v1668 = vpop.f32.mrf.mxu0
        %v1669 = vadd.f32 %v1637, %v1668
        %1670 = vmatmul.f32.gmra.mxu0 %v1592
        %v1671 = vpop.f32.mrf.mxu0
        %v1672 = vadd.f32 %v1637, %v1671
        %1673 = vmatmul.f32.gmra.mxu0 %v1593
        %v1674 = vpop.f32.mrf.mxu0
        %v1675 = vadd.f32 %v1637, %v1674
        %1676 = vmatmul.f32.gmra.mxu0 %v1594
        %v1677 = vpop.f32.mrf.mxu0
        %v1678 = vadd.f32 %v1637, %v1677
        %1679 = vmatmul.f32.gmra.mxu0 %v1595
        %v1680 = vpop.f32.mrf.mxu0
        %v1681 = vadd.f32 %v1637, %v1680
        %1682 = vmatmul.f32.gmra.mxu0 %v1596
        %v1683 = vpop.f32.mrf.mxu0
        %v1684 = vadd.f32 %v1637, %v1683
        %1685 = vmatmul.f32.gmra.mxu0 %v1597
        %v1686 = vpop.f32.mrf.mxu0
        %v1687 = vadd.f32 %v1637, %v1686
        %1688 = vmatmul.f32.gmra.mxu0 %v1598
        %v1689 = vpop.f32.mrf.mxu0
        %v1690 = vadd.f32 %v1637, %v1689
        %1691 = vmatmul.f32.gmra.mxu0 %v1599
        %v1692 = vpop.f32.mrf.mxu0
        %v1693 = vadd.f32 %v1637, %v1692
        %1694 = vmatmul.f32.gmra.mxu0 %v1600
        %v1695 = vpop.f32.mrf.mxu0
        %v1696 = vadd.f32 %v1637, %v1695
        %1697 = vmatmul.f32.gmra.mxu0 %v1601
        %v1698 = vpop.f32.mrf.mxu0
        %v1699 = vadd.f32 %v1637, %v1698
        %1700 = vmatmul.f32.gmra.mxu0 %v1602
        %v1701 = vpop.f32.mrf.mxu0
        %v1702 = vadd.f32 %v1637, %v1701
        %1703 = vmatmul.f32.gmra.mxu0 %v1603
        %v1704 = vpop.f32.mrf.mxu0
        %v1705 = vadd.f32 %v1637, %v1704
        %1706 = vmatmul.f32.gmra.mxu0 %v1604
        %v1707 = vpop.f32.mrf.mxu0
        %v1708 = vadd.f32 %v1637, %v1707
        %1709 = vmatmul.f32.gmra.mxu0 %v1605
        %v1710 = vpop.f32.mrf.mxu0
        %v1711 = vadd.f32 %v1637, %v1710
        %1712 = vmatmul.f32.gmra.mxu0 %v1606
        %v1713 = vpop.f32.mrf.mxu0
        %v1714 = vadd.f32 %v1637, %v1713
        %1715 = vmatmul.f32.gmra.mxu0 %v1607
        %v1716 = vpop.f32.mrf.mxu0
        %v1717 = vadd.f32 %v1637, %v1716
        %1718 = vmatmul.f32.gmra.mxu0 %v1608
        %v1719 = vpop.f32.mrf.mxu0
        %v1720 = vadd.f32 %v1637, %v1719
        %1721 = vmatmul.f32.gmra.mxu0 %v1609
        %v1722 = vpop.f32.mrf.mxu0
        %v1723 = vadd.f32 %v1637, %v1722
        %1724 = vmatmul.f32.gmra.mxu0 %v1610
        %v1725 = vpop.f32.mrf.mxu0
        %v1726 = vadd.f32 %v1637, %v1725
        %1727 = vmatmul.f32.gmra.mxu0 %v1611
        %v1728 = vpop.f32.mrf.mxu0
        %v1729 = vadd.f32 %v1637, %v1728
        %1730 = vmatmul.f32.gmra.mxu0 %v1612
        %v1731 = vpop.f32.mrf.mxu0
        %v1732 = vadd.f32 %v1637, %v1731
        %1733 = vmatmul.f32.gmra.mxu0 %v1613
        %v1734 = vpop.f32.mrf.mxu0
        %v1735 = vadd.f32 %v1637, %v1734
        %1736 = vmatmul.f32.gmra.mxu0 %v1614
        %v1737 = vpop.f32.mrf.mxu0
        %v1738 = vadd.f32 %v1637, %v1737
        %1739 = vmatmul.f32.gmra.mxu0 %v1615
        %v1740 = vpop.f32.mrf.mxu0
        %v1741 = vadd.f32 %v1637, %v1740
        %1742 = vmatmul.f32.gmra.mxu0 %v1616
        %v1743 = vpop.f32.mrf.mxu0
        %v1744 = vadd.f32 %v1637, %v1743
        %1745 = vmatmul.f32.gmra.mxu0 %v1617
        %v1746 = vpop.f32.mrf.mxu0
        %v1747 = vadd.f32 %v1637, %v1746
        %1748 = vmatmul.f32.gmra.mxu0 %v1618
        %v1749 = vpop.f32.mrf.mxu0
        %v1750 = vadd.f32 %v1637, %v1749
        %1751 = vdwg.mxu0
        %v1752 = vadd.f32 %v1657, %v299
        %v1753 = vadd.f32 %v1660, %v300
        %v1754 = vadd.f32 %v1663, %v301
        %v1755 = vadd.f32 %v1666, %v302
        %v1756 = vadd.f32 %v1669, %v303
        %v1757 = vadd.f32 %v1672, %v304
        %v1758 = vadd.f32 %v1675, %v305
        %v1759 = vadd.f32 %v1678, %v306
        %v1760 = vadd.f32 %v1681, %v307
        %v1761 = vadd.f32 %v1684, %v308
        %v1762 = vadd.f32 %v1687, %v309
        %v1763 = vadd.f32 %v1690, %v310
        %v1764 = vadd.f32 %v1693, %v311
        %v1765 = vadd.f32 %v1696, %v312
        %v1766 = vadd.f32 %v1699, %v313
        %v1767 = vadd.f32 %v1702, %v314
        %v1768 = vadd.f32 %v1705, %v315
        %v1769 = vadd.f32 %v1708, %v316
        %v1770 = vadd.f32 %v1711, %v317
        %v1771 = vadd.f32 %v1714, %v318
        %v1772 = vadd.f32 %v1717, %v319
        %v1773 = vadd.f32 %v1720, %v320
        %v1774 = vadd.f32 %v1723, %v321
        %v1775 = vadd.f32 %v1726, %v322
        %v1776 = vadd.f32 %v1729, %v323
        %v1777 = vadd.f32 %v1732, %v324
        %v1778 = vadd.f32 %v1735, %v325
        %v1779 = vadd.f32 %v1738, %v326
        %v1780 = vadd.f32 %v1741, %v327
        %v1781 = vadd.f32 %v1744, %v328
        %v1782 = vadd.f32 %v1747, %v329
        %v1783 = vadd.f32 %v1750, %v330
        %1784 = vst.msk [vmem:[%s298] sm:$0xff] %vm339, %v1752
        %1785 = vst.msk [vmem:[%s298 + $0x8] sm:$0xff] %vm339, %v1753
        %1786 = vst.msk [vmem:[%s298 + $0x10] sm:$0xff] %vm339, %v1754
        %1787 = vst.msk [vmem:[%s298 + $0x18] sm:$0xff] %vm339, %v1755
        %1788 = vst.msk [vmem:[%s298 + $0x20] sm:$0xff] %vm339, %v1756
        %1789 = vst.msk [vmem:[%s298 + $0x28] sm:$0xff] %vm339, %v1757
        %1790 = vst.msk [vmem:[%s298 + $0x30] sm:$0xff] %vm339, %v1758
        %1791 = vst.msk [vmem:[%s298 + $0x38] sm:$0xff] %vm339, %v1759
        %1792 = vst.msk [vmem:[%s298 + $0x40] sm:$0xff] %vm339, %v1760
        %1793 = vst.msk [vmem:[%s298 + $0x48] sm:$0xff] %vm339, %v1761
        %1794 = vst.msk [vmem:[%s298 + $0x50] sm:$0xff] %vm339, %v1762
        %1795 = vst.msk [vmem:[%s298 + $0x58] sm:$0xff] %vm339, %v1763
        %1796 = vst.msk [vmem:[%s298 + $0x60] sm:$0xff] %vm339, %v1764
        %1797 = vst.msk [vmem:[%s298 + $0x68] sm:$0xff] %vm339, %v1765
        %1798 = vst.msk [vmem:[%s298 + $0x70] sm:$0xff] %vm339, %v1766
        %1799 = vst.msk [vmem:[%s298 + $0x78] sm:$0xff] %vm339, %v1767
        %1800 = vst.msk [vmem:[%s298 + $0x80] sm:$0xff] %vm339, %v1768
        %1801 = vst.msk [vmem:[%s298 + $0x88] sm:$0xff] %vm339, %v1769
        %1802 = vst.msk [vmem:[%s298 + $0x90] sm:$0xff] %vm339, %v1770
        %1803 = vst.msk [vmem:[%s298 + $0x98] sm:$0xff] %vm339, %v1771
        %1804 = vst.msk [vmem:[%s298 + $0xa0] sm:$0xff] %vm339, %v1772
        %1805 = vst.msk [vmem:[%s298 + $0xa8] sm:$0xff] %vm339, %v1773
        %1806 = vst.msk [vmem:[%s298 + $0xb0] sm:$0xff] %vm339, %v1774
        %1807 = vst.msk [vmem:[%s298 + $0xb8] sm:$0xff] %vm339, %v1775
        %1808 = vst.msk [vmem:[%s298 + $0xc0] sm:$0xff] %vm339, %v1776
        %1809 = vst.msk [vmem:[%s298 + $0xc8] sm:$0xff] %vm339, %v1777
        %1810 = vst.msk [vmem:[%s298 + $0xd0] sm:$0xff] %vm339, %v1778
        %1811 = vst.msk [vmem:[%s298 + $0xd8] sm:$0xff] %vm339, %v1779
        %1812 = vst.msk [vmem:[%s298 + $0xe0] sm:$0xff] %vm339, %v1780
        %1813 = vst.msk [vmem:[%s298 + $0xe8] sm:$0xff] %vm339, %v1781
        %1814 = vst.msk [vmem:[%s298 + $0xf0] sm:$0xff] %vm339, %v1782
        %1815 = vst.msk [vmem:[%s298 + $0xf8] sm:$0xff] %vm339, %v1783
        %s1816 = sand.u32 %s184, 1
        %s1817 = scalar_lea.sflag [#allocation5], %s1816
        %s1818 = sand.u32 %s184, 1
        %s1819 = smul.addr %s1818, 256
        %s1820 = scalar_lea.vmem [#allocation6], %s1819
        // Predicated region
        $region53: #{tpu_custom_call.1} parent=47 // pred_check
          %p1821 = pneg %p194
        $region54: #{tpu_custom_call.1} parent=47 // pred_check_branch
          %1823 = sbr.rel (%p1821) target = $region56
        $region55: #{tpu_custom_call.1} parent=47 // pred_region
          %1825 = vsyncadd %s1817, 0
          %s1826 = smul.addr %s24, 32
          %s1827 = smul.addr %s1826, 8
          %s1828 = scalar_lea.hbm %s7, %s1827
          %s1829 = sshll.u32 %s1820, 4
          %s1830 = int_to_ptr.vmem [resolvable:$true] %s1829
          %s1831 = sshll.u32 %s1828, 4
          %s1832 = int_to_ptr.hbm [resolvable:$true] %s1831
          %1837 = dma.vmem_to_hbm [thread:$0]  %s1830, 4096, %s1832, %s1817, 128, 128, 8
        $region56: #{tpu_custom_call.1} parent=47 // pred_fallthru
          _
      $region48: #{tpu_custom_call.1} parent=5 // pred_fallthru
        _
      %p1838 = scmp.le.s32.totalorder 2, %s19
      // Predicated region
      $region57: #{tpu_custom_call.1} parent=5 // pred_check
        %p1839 = pneg %p1838
      $region58: #{tpu_custom_call.1} parent=5 // pred_check_branch
        %1841 = sbr.rel (%p1839) target = $region60
      $region59: #{tpu_custom_call.1} parent=5 // pred_region
        %s1842 = ssub.s32 %s19, 2
        // Predicated region
        $region61: #{tpu_custom_call.1} parent=59 // pred_check
          %p1843 = pneg %p200
        $region62: #{tpu_custom_call.1} parent=59 // pred_check_branch
          %1845 = sbr.rel (%p1843) target = $region64
        $region63: #{tpu_custom_call.1} parent=59 // pred_region
          %s1846 = sand.u32 %s185, 1
          %s1847 = scalar_lea.sflag [#allocation5], %s1846
          %s1848 = sand.u32 %s185, 1
          %s1849 = smul.addr %s1848, 256
          %s1850 = scalar_lea.vmem [#allocation6], %s1849
          %1852 = dma.done %s1847, 4096
        $region64: #{tpu_custom_call.1} parent=59 // pred_fallthru
          _
      $region60: #{tpu_custom_call.1} parent=5 // pred_fallthru
        _
    $region6: #{tpu_custom_call.1} parent=1 // loop_footer
      %s23 = sadd.s32 1, %s19
    $region7: #{tpu_custom_call.1} parent=1 // loop_footer_branch
      %18 = sbr.rel target = $region3
    $region8: #{tpu_custom_call.1} parent=1 // loop_exit
      _
    %1853 = vsyncpa [#allocation4], 1
    %s1854 = scalar_lea.sflag [#allocation4], 1
    %1855 = vsyncpa %s1854, 1
    %1856 = vsyncpa [#allocation5], 1
    %s1857 = scalar_lea.sflag [#allocation5], 1
    %1858 = vsyncpa %s1857, 1

</llo_original>
